<compile_context>
chip_gen: v7x
topology: tpu7x:2x2x1
jax: 0.10.0
libtpu: 0.0.40
codegen_flags: <defaults>
</compile_context>

<pallas_src>
import jax
import jax.numpy as jnp
from jax.experimental import pallas as pl
from jax.experimental.pallas import tpu as pltpu

_LANES = 128
_PAIR = 2 * _LANES          # 256 interleaved lanes = 128 (x0, x1) pairs per row
_HIDDEN = 8
_TILE_ROWS = 2048           # row-blocks per grid step (2048*128 = 256K batch elems)
_MIN_TILE_ROWS = 8
_VMEM_LIMIT = 40 * 1024 * 1024   # > v5e's 16 MiB scoped default, < v7x's 64 MiB VMEM


def _round_up(n, m):
    return ((n + m - 1) // m) * m


def _deinterleave_matrix():
    """(256,256) 0/1 permutation: [p0,q0,p1,q1,...] @ P = [p0..p127 | q0..q127]."""
    src = jnp.arange(_PAIR)[:, None]
    dst = jnp.arange(_PAIR)[None, :]
    want = 2 * (dst % _LANES) + dst // _LANES
    return (src == want).astype(jnp.float32)


def mlqp1_kernel(x_ref, p_ref, a1_ref, c1_ref, a2_ref, c2_ref, o_ref):
    # x_ref : (TR, 256) VMEM  interleaved (x0,x1) pairs; batch = row*128 + lane
    # p_ref : (256, 256) VMEM de-interleave permutation (same block every step)
    # a1(8,4) c1(8,) a2(8,) c2(1,) : folded FC1/FC2 params in SMEM (scalar path)
    # o_ref : (TR, 128) VMEM  lane-dense sigmoid output

    # De-interleave on the (otherwise idle) MXU: xs = [x0 | x1] along lanes.
    xs = jnp.dot(x_ref[...], p_ref[...],
                 preferred_element_type=jnp.float32,
                 precision=jax.lax.Precision.HIGHEST)
    x0 = xs[:, :_LANES]
    x1 = xs[:, _LANES:]
    x0q = x0 * x0            # torch.pow(x, 2)
    x1q = x1 * x1

    # Unrolled hidden layer: VPU broadcast-FMA chain + one EUP tanh per unit.
    # sigmoid's 0.5 factors are pre-folded into (a1, c1, a2, c2) by the wrapper.
    y = jnp.zeros_like(x0)
    for j in range(_HIDDEN):
        t = (a1_ref[j, 0] * x0 + a1_ref[j, 1] * x1
             + a1_ref[j, 2] * x0q + a1_ref[j, 3] * x1q + c1_ref[j])
        y = y + a2_ref[j] * jnp.tanh(t)
    # Output sigmoid (its inner 0.5 is folded into a2/c2 already).
    o_ref[...] = 0.5 * jnp.tanh(y + c2_ref[0]) + 0.5


def mlqp1_forward(x, w1, b1, w2, b2, *, tile_rows=_TILE_ROWS):
    """x: (B, 2) f32.  w1: (8, 4), b1: (8,), w2: (8,), b2: (1,)  (torch layout).

    Returns (B, 1) f32, identical to MLQP1.forward.
    """
    B = x.shape[0]
    rb = _round_up(pl.cdiv(B, _LANES), _MIN_TILE_ROWS)   # 128-lane row-blocks
    tr = min(tile_rows, rb)
    if rb >= 4 * _MIN_TILE_ROWS:
        # Keep >= 4 grid steps so dual-TensorCore parts (v7x) get >= 2 steps per
        # core; shrink the tile for mid-size batches instead of a 1-step grid.
        tr = min(tr, max(_MIN_TILE_ROWS,
                         (rb // 4) // _MIN_TILE_ROWS * _MIN_TILE_ROWS))
    rb_pad = _round_up(rb, tr)
    b_pad = rb_pad * _LANES

    xp = x if b_pad == B else jnp.pad(x, ((0, b_pad - B), (0, 0)))
    # Free, contiguous reshape (NO transpose pass): row r holds the interleaved
    # (x0, x1) pairs of batch elements r*128 .. r*128+127.
    xi = xp.reshape(rb_pad, _PAIR)
    perm = _deinterleave_matrix()

    # Fold sigmoid(z) = 0.5*tanh(0.5*z) + 0.5 into the weights (tiny jnp ops).
    w1 = w1.astype(jnp.float32)
    b1 = b1.astype(jnp.float32)
    w2 = w2.astype(jnp.float32)
    b2 = b2.astype(jnp.float32)
    a1 = 0.5 * w1                         # (8, 4)
    c1 = 0.5 * b1                         # (8,)
    a2 = 0.25 * w2                        # (8,)
    c2 = 0.25 * jnp.sum(w2) + 0.5 * b2    # (1,)

    grid = (rb_pad // tr,)
    smem = pl.BlockSpec(memory_space=pltpu.MemorySpace.SMEM)

    out = pl.pallas_call(
        mlqp1_kernel,
        out_shape=jax.ShapeDtypeStruct((rb_pad, _LANES), jnp.float32),
        grid=grid,
        in_specs=[
            pl.BlockSpec((tr, _PAIR), lambda i: (i, 0)),     # x tile (VMEM)
            pl.BlockSpec((_PAIR, _PAIR), lambda i: (0, 0)),  # perm (fetched once)
            smem,   # a1 (8, 4)
            smem,   # c1 (8,)
            smem,   # a2 (8,)
            smem,   # c2 (1,)
        ],
        out_specs=pl.BlockSpec((tr, _LANES), lambda i: (i, 0)),
        compiler_params=pltpu.CompilerParams(
            dimension_semantics=("parallel",),
            vmem_limit_bytes=_VMEM_LIMIT),
        cost_estimate=pl.CostEstimate(
            flops=1110 * b_pad,                      # ~1024 MXU + ~86 VPU / elem
            transcendentals=9 * b_pad,               # 8 hidden + 1 output tanh
            bytes_accessed=12 * b_pad + _PAIR * _PAIR * 4),
    )(xi, perm, a1, c1, a2, c2)

    # NOTE: for unaligned B this slice is a separate XLA copy pass; callers that
    # can consume the padded lane-dense (rb_pad, 128) slab should use `out`.
    return out.reshape(b_pad, 1)[:B]


def init_params(key):
    """Deterministic init mirroring torch.nn.Linear's U(-1/sqrt(fan_in), ...)."""
    k1, k2, k3, k4 = jax.random.split(key, 4)
    bound1 = 1.0 / jnp.sqrt(4.0)   # FC1 fan_in = 4
    bound2 = 1.0 / jnp.sqrt(8.0)   # FC2 fan_in = 8
    w1 = jax.random.uniform(k1, (8, 4), jnp.float32, -bound1, bound1)  # FC1.weight
    b1 = jax.random.uniform(k2, (8,), jnp.float32, -bound1, bound1)    # FC1.bias
    w2 = jax.random.uniform(k3, (8,), jnp.float32, -bound2, bound2)    # FC2.weight[0]
    b2 = jax.random.uniform(k4, (1,), jnp.float32, -bound2, bound2)    # FC2.bias
    return w1, b1, w2, b2


def reference_forward(x, w1, b1, w2, b2):
    """Pure-JAX reference of the PyTorch forward."""
    inp = jnp.concatenate([x, x * x], axis=1)            # (B, 4)
    h = jax.nn.sigmoid(inp @ w1.T + b1)                  # (B, 8)
    return jax.nn.sigmoid(h @ w2[:, None] + b2)          # (B, 1)


if __name__ == "__main__":
    key = jax.random.PRNGKey(0)
    kx, kp = jax.random.split(key)

    B = 1000   # deliberately not a multiple of 128 to exercise the padding path
    x = jax.random.normal(kx, (B, 2), jnp.float32)       # MLQP1 implies 2 input features
    w1, b1, w2, b2 = init_params(kp)

    fwd = jax.jit(mlqp1_forward)
    out = jax.block_until_ready(fwd(x, w1, b1, w2, b2))

    ref = reference_forward(x, w1, b1, w2, b2)
    assert out.shape == (B, 1)
    err = float(jnp.max(jnp.abs(out - ref)))
    assert jnp.allclose(out, ref, atol=1e-5, rtol=1e-5), err

    print("KERNEL_OK")
</pallas_src>

<mosaic_0001>
module attributes {stable_mosaic.version = 11 : i64} {
  func.func @mlqp1_kernel(%arg0: i32, %arg1: memref<8x256xf32, #tpu.memory_space<vmem>>, %arg2: memref<256x256xf32, #tpu.memory_space<vmem>>, %arg3: memref<8x4xf32, #tpu.memory_space<smem>>, %arg4: memref<8xf32, #tpu.memory_space<smem>>, %arg5: memref<8xf32, #tpu.memory_space<smem>>, %arg6: memref<1xf32, #tpu.memory_space<smem>>, %arg7: memref<8x128xf32, #tpu.memory_space<vmem>>) attributes {dimension_semantics = [#tpu.dimension_semantics<parallel>], iteration_bounds = array<i64: 1>, scalar_prefetch = 0 : i64, scratch_operands = 0 : i64, tpu.core_type = #tpu.core_type<tc>, window_params = [{transform_indices = @transform_0, window_bounds = array<i64: 8, 256>}, {pipeline_mode = #tpu.pipeline_mode<synchronous>, transform_indices = @transform_1, window_bounds = array<i64: 256, 256>}, {transform_indices = @transform_2, window_bounds = array<i64: 8, 4>}, {transform_indices = @transform_3, window_bounds = array<i64: 8>}, {transform_indices = @transform_4, window_bounds = array<i64: 8>}, {transform_indices = @transform_5, window_bounds = array<i64: 1>}, {transform_indices = @transform_6, window_bounds = array<i64: 8, 128>}]} {
    %c0 = arith.constant 0 : index
    %c0_0 = arith.constant 0 : index
    %0 = vector.load %arg1[%c0, %c0_0] : memref<8x256xf32, #tpu.memory_space<vmem>>, vector<8x256xf32>
    %c0_1 = arith.constant 0 : index
    %c0_2 = arith.constant 0 : index
    %1 = vector.load %arg2[%c0_1, %c0_2] : memref<256x256xf32, #tpu.memory_space<vmem>>, vector<256x256xf32>
    %cst = arith.constant dense<0.000000e+00> : vector<8x256xf32>
    %2 = tpu.matmul %0, %1, %cst {dimension_numbers = #tpu.dot_dimension_numbers<[1], [0], [0], [1], [0, 0, 1, 1], [], []>, precision = #tpu.contract_precision<fp32>} : vector<8x256xf32>, vector<256x256xf32>, vector<8x256xf32> -> vector<8x256xf32>
    %3 = vector.extract_strided_slice %2 {offsets = [0, 0], sizes = [8, 128], strides = [1, 1]} : vector<8x256xf32> to vector<8x128xf32>
    %4 = vector.extract_strided_slice %2 {offsets = [0, 128], sizes = [8, 128], strides = [1, 1]} : vector<8x256xf32> to vector<8x128xf32>
    %5 = arith.mulf %3, %3 : vector<8x128xf32>
    %6 = arith.mulf %4, %4 : vector<8x128xf32>
    %cst_3 = arith.constant 0.000000e+00 : f32
    %7 = vector.broadcast %cst_3 : f32 to vector<8x128xf32>
    %c0_4 = arith.constant 0 : index
    %c0_5 = arith.constant 0 : index
    %8 = memref.load %arg3[%c0_4, %c0_5] : memref<8x4xf32, #tpu.memory_space<smem>>
    %9 = vector.broadcast %8 : f32 to vector<8x128xf32>
    %10 = arith.mulf %9, %3 : vector<8x128xf32>
    %c0_6 = arith.constant 0 : index
    %c1 = arith.constant 1 : index
    %11 = memref.load %arg3[%c0_6, %c1] : memref<8x4xf32, #tpu.memory_space<smem>>
    %12 = vector.broadcast %11 : f32 to vector<8x128xf32>
    %13 = arith.mulf %12, %4 : vector<8x128xf32>
    %14 = arith.addf %10, %13 : vector<8x128xf32>
    %c0_7 = arith.constant 0 : index
    %c2 = arith.constant 2 : index
    %15 = memref.load %arg3[%c0_7, %c2] : memref<8x4xf32, #tpu.memory_space<smem>>
    %16 = vector.broadcast %15 : f32 to vector<8x128xf32>
    %17 = arith.mulf %16, %5 : vector<8x128xf32>
    %18 = arith.addf %14, %17 : vector<8x128xf32>
    %c0_8 = arith.constant 0 : index
    %c3 = arith.constant 3 : index
    %19 = memref.load %arg3[%c0_8, %c3] : memref<8x4xf32, #tpu.memory_space<smem>>
    %20 = vector.broadcast %19 : f32 to vector<8x128xf32>
    %21 = arith.mulf %20, %6 : vector<8x128xf32>
    %22 = arith.addf %18, %21 : vector<8x128xf32>
    %c0_9 = arith.constant 0 : index
    %23 = memref.load %arg4[%c0_9] : memref<8xf32, #tpu.memory_space<smem>>
    %24 = vector.broadcast %23 : f32 to vector<8x128xf32>
    %25 = arith.addf %22, %24 : vector<8x128xf32>
    %c0_10 = arith.constant 0 : index
    %26 = memref.load %arg5[%c0_10] : memref<8xf32, #tpu.memory_space<smem>>
    %27 = math.tanh %25 : vector<8x128xf32>
    %28 = vector.broadcast %26 : f32 to vector<8x128xf32>
    %29 = arith.mulf %28, %27 : vector<8x128xf32>
    %30 = arith.addf %7, %29 : vector<8x128xf32>
    %c1_11 = arith.constant 1 : index
    %c0_12 = arith.constant 0 : index
    %31 = memref.load %arg3[%c1_11, %c0_12] : memref<8x4xf32, #tpu.memory_space<smem>>
    %32 = vector.broadcast %31 : f32 to vector<8x128xf32>
    %33 = arith.mulf %32, %3 : vector<8x128xf32>
    %c1_13 = arith.constant 1 : index
    %c1_14 = arith.constant 1 : index
    %34 = memref.load %arg3[%c1_13, %c1_14] : memref<8x4xf32, #tpu.memory_space<smem>>
    %35 = vector.broadcast %34 : f32 to vector<8x128xf32>
    %36 = arith.mulf %35, %4 : vector<8x128xf32>
    %37 = arith.addf %33, %36 : vector<8x128xf32>
    %c1_15 = arith.constant 1 : index
    %c2_16 = arith.constant 2 : index
    %38 = memref.load %arg3[%c1_15, %c2_16] : memref<8x4xf32, #tpu.memory_space<smem>>
    %39 = vector.broadcast %38 : f32 to vector<8x128xf32>
    %40 = arith.mulf %39, %5 : vector<8x128xf32>
    %41 = arith.addf %37, %40 : vector<8x128xf32>
    %c1_17 = arith.constant 1 : index
    %c3_18 = arith.constant 3 : index
    %42 = memref.load %arg3[%c1_17, %c3_18] : memref<8x4xf32, #tpu.memory_space<smem>>
    %43 = vector.broadcast %42 : f32 to vector<8x128xf32>
    %44 = arith.mulf %43, %6 : vector<8x128xf32>
    %45 = arith.addf %41, %44 : vector<8x128xf32>
    %c1_19 = arith.constant 1 : index
    %46 = memref.load %arg4[%c1_19] : memref<8xf32, #tpu.memory_space<smem>>
    %47 = vector.broadcast %46 : f32 to vector<8x128xf32>
    %48 = arith.addf %45, %47 : vector<8x128xf32>
    %c1_20 = arith.constant 1 : index
    %49 = memref.load %arg5[%c1_20] : memref<8xf32, #tpu.memory_space<smem>>
    %50 = math.tanh %48 : vector<8x128xf32>
    %51 = vector.broadcast %49 : f32 to vector<8x128xf32>
    %52 = arith.mulf %51, %50 : vector<8x128xf32>
    %53 = arith.addf %30, %52 : vector<8x128xf32>
    %c2_21 = arith.constant 2 : index
    %c0_22 = arith.constant 0 : index
    %54 = memref.load %arg3[%c2_21, %c0_22] : memref<8x4xf32, #tpu.memory_space<smem>>
    %55 = vector.broadcast %54 : f32 to vector<8x128xf32>
    %56 = arith.mulf %55, %3 : vector<8x128xf32>
    %c2_23 = arith.constant 2 : index
    %c1_24 = arith.constant 1 : index
    %57 = memref.load %arg3[%c2_23, %c1_24] : memref<8x4xf32, #tpu.memory_space<smem>>
    %58 = vector.broadcast %57 : f32 to vector<8x128xf32>
    %59 = arith.mulf %58, %4 : vector<8x128xf32>
    %60 = arith.addf %56, %59 : vector<8x128xf32>
    %c2_25 = arith.constant 2 : index
    %c2_26 = arith.constant 2 : index
    %61 = memref.load %arg3[%c2_25, %c2_26] : memref<8x4xf32, #tpu.memory_space<smem>>
    %62 = vector.broadcast %61 : f32 to vector<8x128xf32>
    %63 = arith.mulf %62, %5 : vector<8x128xf32>
    %64 = arith.addf %60, %63 : vector<8x128xf32>
    %c2_27 = arith.constant 2 : index
    %c3_28 = arith.constant 3 : index
    %65 = memref.load %arg3[%c2_27, %c3_28] : memref<8x4xf32, #tpu.memory_space<smem>>
    %66 = vector.broadcast %65 : f32 to vector<8x128xf32>
    %67 = arith.mulf %66, %6 : vector<8x128xf32>
    %68 = arith.addf %64, %67 : vector<8x128xf32>
    %c2_29 = arith.constant 2 : index
    %69 = memref.load %arg4[%c2_29] : memref<8xf32, #tpu.memory_space<smem>>
    %70 = vector.broadcast %69 : f32 to vector<8x128xf32>
    %71 = arith.addf %68, %70 : vector<8x128xf32>
    %c2_30 = arith.constant 2 : index
    %72 = memref.load %arg5[%c2_30] : memref<8xf32, #tpu.memory_space<smem>>
    %73 = math.tanh %71 : vector<8x128xf32>
    %74 = vector.broadcast %72 : f32 to vector<8x128xf32>
    %75 = arith.mulf %74, %73 : vector<8x128xf32>
    %76 = arith.addf %53, %75 : vector<8x128xf32>
    %c3_31 = arith.constant 3 : index
    %c0_32 = arith.constant 0 : index
    %77 = memref.load %arg3[%c3_31, %c0_32] : memref<8x4xf32, #tpu.memory_space<smem>>
    %78 = vector.broadcast %77 : f32 to vector<8x128xf32>
    %79 = arith.mulf %78, %3 : vector<8x128xf32>
    %c3_33 = arith.constant 3 : index
    %c1_34 = arith.constant 1 : index
    %80 = memref.load %arg3[%c3_33, %c1_34] : memref<8x4xf32, #tpu.memory_space<smem>>
    %81 = vector.broadcast %80 : f32 to vector<8x128xf32>
    %82 = arith.mulf %81, %4 : vector<8x128xf32>
    %83 = arith.addf %79, %82 : vector<8x128xf32>
    %c3_35 = arith.constant 3 : index
    %c2_36 = arith.constant 2 : index
    %84 = memref.load %arg3[%c3_35, %c2_36] : memref<8x4xf32, #tpu.memory_space<smem>>
    %85 = vector.broadcast %84 : f32 to vector<8x128xf32>
    %86 = arith.mulf %85, %5 : vector<8x128xf32>
    %87 = arith.addf %83, %86 : vector<8x128xf32>
    %c3_37 = arith.constant 3 : index
    %c3_38 = arith.constant 3 : index
    %88 = memref.load %arg3[%c3_37, %c3_38] : memref<8x4xf32, #tpu.memory_space<smem>>
    %89 = vector.broadcast %88 : f32 to vector<8x128xf32>
    %90 = arith.mulf %89, %6 : vector<8x128xf32>
    %91 = arith.addf %87, %90 : vector<8x128xf32>
    %c3_39 = arith.constant 3 : index
    %92 = memref.load %arg4[%c3_39] : memref<8xf32, #tpu.memory_space<smem>>
    %93 = vector.broadcast %92 : f32 to vector<8x128xf32>
    %94 = arith.addf %91, %93 : vector<8x128xf32>
    %c3_40 = arith.constant 3 : index
    %95 = memref.load %arg5[%c3_40] : memref<8xf32, #tpu.memory_space<smem>>
    %96 = math.tanh %94 : vector<8x128xf32>
    %97 = vector.broadcast %95 : f32 to vector<8x128xf32>
    %98 = arith.mulf %97, %96 : vector<8x128xf32>
    %99 = arith.addf %76, %98 : vector<8x128xf32>
    %c4 = arith.constant 4 : index
    %c0_41 = arith.constant 0 : index
    %100 = memref.load %arg3[%c4, %c0_41] : memref<8x4xf32, #tpu.memory_space<smem>>
    %101 = vector.broadcast %100 : f32 to vector<8x128xf32>
    %102 = arith.mulf %101, %3 : vector<8x128xf32>
    %c4_42 = arith.constant 4 : index
    %c1_43 = arith.constant 1 : index
    %103 = memref.load %arg3[%c4_42, %c1_43] : memref<8x4xf32, #tpu.memory_space<smem>>
    %104 = vector.broadcast %103 : f32 to vector<8x128xf32>
    %105 = arith.mulf %104, %4 : vector<8x128xf32>
    %106 = arith.addf %102, %105 : vector<8x128xf32>
    %c4_44 = arith.constant 4 : index
    %c2_45 = arith.constant 2 : index
    %107 = memref.load %arg3[%c4_44, %c2_45] : memref<8x4xf32, #tpu.memory_space<smem>>
    %108 = vector.broadcast %107 : f32 to vector<8x128xf32>
    %109 = arith.mulf %108, %5 : vector<8x128xf32>
    %110 = arith.addf %106, %109 : vector<8x128xf32>
    %c4_46 = arith.constant 4 : index
    %c3_47 = arith.constant 3 : index
    %111 = memref.load %arg3[%c4_46, %c3_47] : memref<8x4xf32, #tpu.memory_space<smem>>
    %112 = vector.broadcast %111 : f32 to vector<8x128xf32>
    %113 = arith.mulf %112, %6 : vector<8x128xf32>
    %114 = arith.addf %110, %113 : vector<8x128xf32>
    %c4_48 = arith.constant 4 : index
    %115 = memref.load %arg4[%c4_48] : memref<8xf32, #tpu.memory_space<smem>>
    %116 = vector.broadcast %115 : f32 to vector<8x128xf32>
    %117 = arith.addf %114, %116 : vector<8x128xf32>
    %c4_49 = arith.constant 4 : index
    %118 = memref.load %arg5[%c4_49] : memref<8xf32, #tpu.memory_space<smem>>
    %119 = math.tanh %117 : vector<8x128xf32>
    %120 = vector.broadcast %118 : f32 to vector<8x128xf32>
    %121 = arith.mulf %120, %119 : vector<8x128xf32>
    %122 = arith.addf %99, %121 : vector<8x128xf32>
    %c5 = arith.constant 5 : index
    %c0_50 = arith.constant 0 : index
    %123 = memref.load %arg3[%c5, %c0_50] : memref<8x4xf32, #tpu.memory_space<smem>>
    %124 = vector.broadcast %123 : f32 to vector<8x128xf32>
    %125 = arith.mulf %124, %3 : vector<8x128xf32>
    %c5_51 = arith.constant 5 : index
    %c1_52 = arith.constant 1 : index
    %126 = memref.load %arg3[%c5_51, %c1_52] : memref<8x4xf32, #tpu.memory_space<smem>>
    %127 = vector.broadcast %126 : f32 to vector<8x128xf32>
    %128 = arith.mulf %127, %4 : vector<8x128xf32>
    %129 = arith.addf %125, %128 : vector<8x128xf32>
    %c5_53 = arith.constant 5 : index
    %c2_54 = arith.constant 2 : index
    %130 = memref.load %arg3[%c5_53, %c2_54] : memref<8x4xf32, #tpu.memory_space<smem>>
    %131 = vector.broadcast %130 : f32 to vector<8x128xf32>
    %132 = arith.mulf %131, %5 : vector<8x128xf32>
    %133 = arith.addf %129, %132 : vector<8x128xf32>
    %c5_55 = arith.constant 5 : index
    %c3_56 = arith.constant 3 : index
    %134 = memref.load %arg3[%c5_55, %c3_56] : memref<8x4xf32, #tpu.memory_space<smem>>
    %135 = vector.broadcast %134 : f32 to vector<8x128xf32>
    %136 = arith.mulf %135, %6 : vector<8x128xf32>
    %137 = arith.addf %133, %136 : vector<8x128xf32>
    %c5_57 = arith.constant 5 : index
    %138 = memref.load %arg4[%c5_57] : memref<8xf32, #tpu.memory_space<smem>>
    %139 = vector.broadcast %138 : f32 to vector<8x128xf32>
    %140 = arith.addf %137, %139 : vector<8x128xf32>
    %c5_58 = arith.constant 5 : index
    %141 = memref.load %arg5[%c5_58] : memref<8xf32, #tpu.memory_space<smem>>
    %142 = math.tanh %140 : vector<8x128xf32>
    %143 = vector.broadcast %141 : f32 to vector<8x128xf32>
    %144 = arith.mulf %143, %142 : vector<8x128xf32>
    %145 = arith.addf %122, %144 : vector<8x128xf32>
    %c6 = arith.constant 6 : index
    %c0_59 = arith.constant 0 : index
    %146 = memref.load %arg3[%c6, %c0_59] : memref<8x4xf32, #tpu.memory_space<smem>>
    %147 = vector.broadcast %146 : f32 to vector<8x128xf32>
    %148 = arith.mulf %147, %3 : vector<8x128xf32>
    %c6_60 = arith.constant 6 : index
    %c1_61 = arith.constant 1 : index
    %149 = memref.load %arg3[%c6_60, %c1_61] : memref<8x4xf32, #tpu.memory_space<smem>>
    %150 = vector.broadcast %149 : f32 to vector<8x128xf32>
    %151 = arith.mulf %150, %4 : vector<8x128xf32>
    %152 = arith.addf %148, %151 : vector<8x128xf32>
    %c6_62 = arith.constant 6 : index
    %c2_63 = arith.constant 2 : index
    %153 = memref.load %arg3[%c6_62, %c2_63] : memref<8x4xf32, #tpu.memory_space<smem>>
    %154 = vector.broadcast %153 : f32 to vector<8x128xf32>
    %155 = arith.mulf %154, %5 : vector<8x128xf32>
    %156 = arith.addf %152, %155 : vector<8x128xf32>
    %c6_64 = arith.constant 6 : index
    %c3_65 = arith.constant 3 : index
    %157 = memref.load %arg3[%c6_64, %c3_65] : memref<8x4xf32, #tpu.memory_space<smem>>
    %158 = vector.broadcast %157 : f32 to vector<8x128xf32>
    %159 = arith.mulf %158, %6 : vector<8x128xf32>
    %160 = arith.addf %156, %159 : vector<8x128xf32>
    %c6_66 = arith.constant 6 : index
    %161 = memref.load %arg4[%c6_66] : memref<8xf32, #tpu.memory_space<smem>>
    %162 = vector.broadcast %161 : f32 to vector<8x128xf32>
    %163 = arith.addf %160, %162 : vector<8x128xf32>
    %c6_67 = arith.constant 6 : index
    %164 = memref.load %arg5[%c6_67] : memref<8xf32, #tpu.memory_space<smem>>
    %165 = math.tanh %163 : vector<8x128xf32>
    %166 = vector.broadcast %164 : f32 to vector<8x128xf32>
    %167 = arith.mulf %166, %165 : vector<8x128xf32>
    %168 = arith.addf %145, %167 : vector<8x128xf32>
    %c7 = arith.constant 7 : index
    %c0_68 = arith.constant 0 : index
    %169 = memref.load %arg3[%c7, %c0_68] : memref<8x4xf32, #tpu.memory_space<smem>>
    %170 = vector.broadcast %169 : f32 to vector<8x128xf32>
    %171 = arith.mulf %170, %3 : vector<8x128xf32>
    %c7_69 = arith.constant 7 : index
    %c1_70 = arith.constant 1 : index
    %172 = memref.load %arg3[%c7_69, %c1_70] : memref<8x4xf32, #tpu.memory_space<smem>>
    %173 = vector.broadcast %172 : f32 to vector<8x128xf32>
    %174 = arith.mulf %173, %4 : vector<8x128xf32>
    %175 = arith.addf %171, %174 : vector<8x128xf32>
    %c7_71 = arith.constant 7 : index
    %c2_72 = arith.constant 2 : index
    %176 = memref.load %arg3[%c7_71, %c2_72] : memref<8x4xf32, #tpu.memory_space<smem>>
    %177 = vector.broadcast %176 : f32 to vector<8x128xf32>
    %178 = arith.mulf %177, %5 : vector<8x128xf32>
    %179 = arith.addf %175, %178 : vector<8x128xf32>
    %c7_73 = arith.constant 7 : index
    %c3_74 = arith.constant 3 : index
    %180 = memref.load %arg3[%c7_73, %c3_74] : memref<8x4xf32, #tpu.memory_space<smem>>
    %181 = vector.broadcast %180 : f32 to vector<8x128xf32>
    %182 = arith.mulf %181, %6 : vector<8x128xf32>
    %183 = arith.addf %179, %182 : vector<8x128xf32>
    %c7_75 = arith.constant 7 : index
    %184 = memref.load %arg4[%c7_75] : memref<8xf32, #tpu.memory_space<smem>>
    %185 = vector.broadcast %184 : f32 to vector<8x128xf32>
    %186 = arith.addf %183, %185 : vector<8x128xf32>
    %c7_76 = arith.constant 7 : index
    %187 = memref.load %arg5[%c7_76] : memref<8xf32, #tpu.memory_space<smem>>
    %188 = math.tanh %186 : vector<8x128xf32>
    %189 = vector.broadcast %187 : f32 to vector<8x128xf32>
    %190 = arith.mulf %189, %188 : vector<8x128xf32>
    %191 = arith.addf %168, %190 : vector<8x128xf32>
    %c0_77 = arith.constant 0 : index
    %192 = memref.load %arg6[%c0_77] : memref<1xf32, #tpu.memory_space<smem>>
    %193 = vector.broadcast %192 : f32 to vector<8x128xf32>
    %194 = arith.addf %191, %193 : vector<8x128xf32>
    %195 = math.tanh %194 : vector<8x128xf32>
    %cst_78 = arith.constant 5.000000e-01 : f32
    %196 = vector.broadcast %cst_78 : f32 to vector<8x128xf32>
    %197 = arith.mulf %196, %195 : vector<8x128xf32>
    %cst_79 = arith.constant 5.000000e-01 : f32
    %198 = vector.broadcast %cst_79 : f32 to vector<8x128xf32>
    %199 = arith.addf %197, %198 : vector<8x128xf32>
    %c0_80 = arith.constant 0 : index
    %c0_81 = arith.constant 0 : index
    %200 = vector.load %arg7[%c0_80, %c0_81] : memref<8x128xf32, #tpu.memory_space<vmem>>, vector<8x128xf32>
    tpu.vector_store %arg7[%c0_80, %c0_81], %199 {strides = array<i32>} : memref<8x128xf32, #tpu.memory_space<vmem>>, vector<8x128xf32>,
    return
  }
  func.func @transform_0(%arg0: i32) -> (i32, i32) {
    %c0_i32 = arith.constant 0 : i32
    %c0_i32_0 = arith.constant 0 : i32
    return %arg0, %c0_i32 : i32, i32
  }
  func.func @transform_1(%arg0: i32) -> (i32, i32) {
    %c0_i32 = arith.constant 0 : i32
    %c0_i32_0 = arith.constant 0 : i32
    %c0_i32_1 = arith.constant 0 : i32
    return %c0_i32, %c0_i32_0 : i32, i32
  }
  func.func @transform_2(%arg0: i32) -> (i32, i32) {
    %c0_i32 = arith.constant 0 : i32
    %c0_i32_0 = arith.constant 0 : i32
    %c0_i32_1 = arith.constant 0 : i32
    return %c0_i32, %c0_i32_0 : i32, i32
  }
  func.func @transform_3(%arg0: i32) -> i32 {
    %c0_i32 = arith.constant 0 : i32
    %c0_i32_0 = arith.constant 0 : i32
    return %c0_i32 : i32
  }
  func.func @transform_4(%arg0: i32) -> i32 {
    %c0_i32 = arith.constant 0 : i32
    %c0_i32_0 = arith.constant 0 : i32
    return %c0_i32 : i32
  }
  func.func @transform_5(%arg0: i32) -> i32 {
    %c0_i32 = arith.constant 0 : i32
    %c0_i32_0 = arith.constant 0 : i32
    return %c0_i32 : i32
  }
  func.func @transform_6(%arg0: i32) -> (i32, i32) {
    %c0_i32 = arith.constant 0 : i32
    %c0_i32_0 = arith.constant 0 : i32
    return %arg0, %c0_i32 : i32, i32
  }
}

</mosaic_0001>

<llo_original>
// kernel: mlqp1_forward.1
$region0: #{mlqp1_forward.1}
  #allocation0 [shape = 'u32[]', space=smem, size = 0x4, offset = 0x4, fixed_abs, tag = 'smem constant byte address 0x4 - core index']
  #allocation1 [shape = 'u32[144,128]{1,0:T(1,128)}', space=vmem, size = 0x12000, scoped, tag = 'internal scratch']
  #allocation2 [shape = 'f32[1]{0:T(128)S(6)}', space=smem, size = 0x200, scoped, tag = 'scoped memory for mlqp1_forward.1']
  %s0 = inlined_call_operand.vmem [shape: f32[8,256], index: 0, kind: input, shape index: {}]
  %s1 = inlined_call_operand.vmem [shape: f32[256,256], index: 1, kind: input, shape index: {}]
  %s2 = inlined_call_operand.vmem [shape: f32[8,4], index: 2, kind: input, shape index: {}]
  %s3 = inlined_call_operand.vmem [shape: f32[8], index: 3, kind: input, shape index: {}]
  %s4 = inlined_call_operand.vmem [shape: f32[8], index: 4, kind: input, shape index: {}]
  %s5 = inlined_call_operand.<no memory space> [shape: f32[1], index: 5, kind: input, shape index: {}]
  %s6 = inlined_call_operand.hbm [shape: f32[8,128], index: 6, kind: output, shape index: {}]
  %s7 = sld [smem:[#allocation0]]
  $region46: #{mlqp1_forward.1} parent=0
    _
  %s9 = ssub.s32 1, %s7
  %s10 = scalar_select 0, %s9, %s7
  %11 = sst [smem:[#allocation2]] %s5
  $region1: #{mlqp1_forward.1} parent=0
    #allocation3 [shape = 'u8[4096]{0}', space=smem, size = 0x1000, scoped, tag = 'input window, operand 2, single buffered']
    #allocation4 [shape = 's32[1]{0}', space=sflag, size = 0x4, scoped, tag = 'scoped memory for mlqp1_forward.1']
    #allocation5 [shape = 's32[1]{0}', space=sflag, size = 0x4, scoped, tag = 'scoped memory for mlqp1_forward.1']
    #allocation6 [shape = 'u8[512]{0}', space=smem, size = 0x200, scoped, tag = 'input window, operand 3, single buffered']
    #allocation7 [shape = 's32[1]{0}', space=sflag, size = 0x4, scoped, tag = 'scoped memory for mlqp1_forward.1']
    #allocation8 [shape = 'u8[512]{0}', space=smem, size = 0x200, scoped, tag = 'input window, operand 4, single buffered']
    #allocation9 [shape = 'u8[4096]{0}', space=vmem, size = 0x1000, scoped, tag = 'output window, operand 0, single buffered']
    %12 = vsyncpa [#allocation5], 0
    %13 = vsyncpa [#allocation7], 0
    %14 = vsyncpa [#allocation4], 0
    // Predicated region
    $region2: #{mlqp1_forward.1} parent=1 // pred_check
      _
    $region3: #{mlqp1_forward.1} parent=1 // pred_check_branch
      %16 = sbr.rel (0) target = $region5
    $region4: #{mlqp1_forward.1} parent=1 // pred_region
      _
    $region5: #{mlqp1_forward.1} parent=1 // pred_fallthru
      _
    // Predicated region
    $region6: #{mlqp1_forward.1} parent=1 // pred_check
      _
    $region7: #{mlqp1_forward.1} parent=1 // pred_check_branch
      %18 = sbr.rel (0) target = $region9
    $region8: #{mlqp1_forward.1} parent=1 // pred_region
      _
    $region9: #{mlqp1_forward.1} parent=1 // pred_fallthru
      _
    // Predicated region
    $region10: #{mlqp1_forward.1} parent=1 // pred_check
      _
    $region11: #{mlqp1_forward.1} parent=1 // pred_check_branch
      %20 = sbr.rel (0) target = $region13
    $region12: #{mlqp1_forward.1} parent=1 // pred_region
      %s22 = ssub.s32 128, 128
      %23 = vsyncadd [#allocation5], %s22
      %s25 = sshll.u32 %s2, 4
      %s26 = int_to_ptr.vmem [resolvable:$true] %s25
      %28 = dma.vmem_to_smem %s26, 128, [#allocation3], [#allocation5]
    $region13: #{mlqp1_forward.1} parent=1 // pred_fallthru
      _
    // Predicated region
    $region14: #{mlqp1_forward.1} parent=1 // pred_check
      _
    $region15: #{mlqp1_forward.1} parent=1 // pred_check_branch
      %30 = sbr.rel (0) target = $region17
    $region16: #{mlqp1_forward.1} parent=1 // pred_region
      %s32 = ssub.s32 16, 16
      %33 = vsyncadd [#allocation7], %s32
      %s35 = sshll.u32 %s3, 4
      %s36 = int_to_ptr.vmem [resolvable:$true] %s35
      %38 = dma.vmem_to_smem %s36, 16, [#allocation6], [#allocation7]
    $region17: #{mlqp1_forward.1} parent=1 // pred_fallthru
      _
    // Predicated region
    $region18: #{mlqp1_forward.1} parent=1 // pred_check
      _
    $region19: #{mlqp1_forward.1} parent=1 // pred_check_branch
      %40 = sbr.rel (0) target = $region21
    $region20: #{mlqp1_forward.1} parent=1 // pred_region
      %s42 = ssub.s32 16, 16
      %43 = vsyncadd [#allocation7], %s42
      %s45 = sshll.u32 %s4, 4
      %s46 = int_to_ptr.vmem [resolvable:$true] %s45
      %48 = dma.vmem_to_smem %s46, 16, [#allocation8], [#allocation7]
    $region21: #{mlqp1_forward.1} parent=1 // pred_fallthru
      _
    // Predicated region
    $region22: #{mlqp1_forward.1} parent=1 // pred_check
      _
    $region23: #{mlqp1_forward.1} parent=1 // pred_check_branch
      %50 = sbr.rel (0) target = $region25
    $region24: #{mlqp1_forward.1} parent=1 // pred_region
      _
    $region25: #{mlqp1_forward.1} parent=1 // pred_fallthru
      _
    // Predicated region
    $region26: #{mlqp1_forward.1} parent=1 // pred_check
      _
    $region27: #{mlqp1_forward.1} parent=1 // pred_check_branch
      %52 = sbr.rel (0) target = $region29
    $region28: #{mlqp1_forward.1} parent=1 // pred_region
      %53 = dma.done [#allocation5], 128
    $region29: #{mlqp1_forward.1} parent=1 // pred_fallthru
      _
    // Predicated region
    $region30: #{mlqp1_forward.1} parent=1 // pred_check
      _
    $region31: #{mlqp1_forward.1} parent=1 // pred_check_branch
      %55 = sbr.rel (0) target = $region33
    $region32: #{mlqp1_forward.1} parent=1 // pred_region
      %56 = dma.done [#allocation7], 16
    $region33: #{mlqp1_forward.1} parent=1 // pred_fallthru
      _
    // Predicated region
    $region34: #{mlqp1_forward.1} parent=1 // pred_check
      _
    $region35: #{mlqp1_forward.1} parent=1 // pred_check_branch
      %58 = sbr.rel (0) target = $region37
    $region36: #{mlqp1_forward.1} parent=1 // pred_region
      %59 = dma.done [#allocation7], 16
    $region37: #{mlqp1_forward.1} parent=1 // pred_fallthru
      _
    %60 = sfence
    %v61 = vld [vmem:[%s0] sm:$0xff]
    %v62 = vld [vmem:[%s0 + $0x8] sm:$0xff]
    %v63 = vld [vmem:[%s1] sm:$0xff]
    %v64 = vld [vmem:[%s1 + $0x8] sm:$0xff]
    %v65 = vld [vmem:[%s1 + $0x10] sm:$0xff]
    %v66 = vld [vmem:[%s1 + $0x18] sm:$0xff]
    %v67 = vld [vmem:[%s1 + $0x20] sm:$0xff]
    %v68 = vld [vmem:[%s1 + $0x28] sm:$0xff]
    %v69 = vld [vmem:[%s1 + $0x30] sm:$0xff]
    %v70 = vld [vmem:[%s1 + $0x38] sm:$0xff]
    %v71 = vld [vmem:[%s1 + $0x40] sm:$0xff]
    %v72 = vld [vmem:[%s1 + $0x48] sm:$0xff]
    %v73 = vld [vmem:[%s1 + $0x50] sm:$0xff]
    %v74 = vld [vmem:[%s1 + $0x58] sm:$0xff]
    %v75 = vld [vmem:[%s1 + $0x60] sm:$0xff]
    %v76 = vld [vmem:[%s1 + $0x68] sm:$0xff]
    %v77 = vld [vmem:[%s1 + $0x70] sm:$0xff]
    %v78 = vld [vmem:[%s1 + $0x78] sm:$0xff]
    %v79 = vld [vmem:[%s1 + $0x80] sm:$0xff]
    %v80 = vld [vmem:[%s1 + $0x88] sm:$0xff]
    %v81 = vld [vmem:[%s1 + $0x90] sm:$0xff]
    %v82 = vld [vmem:[%s1 + $0x98] sm:$0xff]
    %v83 = vld [vmem:[%s1 + $0xa0] sm:$0xff]
    %v84 = vld [vmem:[%s1 + $0xa8] sm:$0xff]
    %v85 = vld [vmem:[%s1 + $0xb0] sm:$0xff]
    %v86 = vld [vmem:[%s1 + $0xb8] sm:$0xff]
    %v87 = vld [vmem:[%s1 + $0xc0] sm:$0xff]
    %v88 = vld [vmem:[%s1 + $0xc8] sm:$0xff]
    %v89 = vld [vmem:[%s1 + $0xd0] sm:$0xff]
    %v90 = vld [vmem:[%s1 + $0xd8] sm:$0xff]
    %v91 = vld [vmem:[%s1 + $0xe0] sm:$0xff]
    %v92 = vld [vmem:[%s1 + $0xe8] sm:$0xff]
    %v93 = vld [vmem:[%s1 + $0xf0] sm:$0xff]
    %v94 = vld [vmem:[%s1 + $0xf8] sm:$0xff]
    %v95 = vld [vmem:[%s1 + $0x100] sm:$0xff]
    %v96 = vld [vmem:[%s1 + $0x108] sm:$0xff]
    %v97 = vld [vmem:[%s1 + $0x110] sm:$0xff]
    %v98 = vld [vmem:[%s1 + $0x118] sm:$0xff]
    %v99 = vld [vmem:[%s1 + $0x120] sm:$0xff]
    %v100 = vld [vmem:[%s1 + $0x128] sm:$0xff]
    %v101 = vld [vmem:[%s1 + $0x130] sm:$0xff]
    %v102 = vld [vmem:[%s1 + $0x138] sm:$0xff]
    %v103 = vld [vmem:[%s1 + $0x140] sm:$0xff]
    %v104 = vld [vmem:[%s1 + $0x148] sm:$0xff]
    %v105 = vld [vmem:[%s1 + $0x150] sm:$0xff]
    %v106 = vld [vmem:[%s1 + $0x158] sm:$0xff]
    %v107 = vld [vmem:[%s1 + $0x160] sm:$0xff]
    %v108 = vld [vmem:[%s1 + $0x168] sm:$0xff]
    %v109 = vld [vmem:[%s1 + $0x170] sm:$0xff]
    %v110 = vld [vmem:[%s1 + $0x178] sm:$0xff]
    %v111 = vld [vmem:[%s1 + $0x180] sm:$0xff]
    %v112 = vld [vmem:[%s1 + $0x188] sm:$0xff]
    %v113 = vld [vmem:[%s1 + $0x190] sm:$0xff]
    %v114 = vld [vmem:[%s1 + $0x198] sm:$0xff]
    %v115 = vld [vmem:[%s1 + $0x1a0] sm:$0xff]
    %v116 = vld [vmem:[%s1 + $0x1a8] sm:$0xff]
    %v117 = vld [vmem:[%s1 + $0x1b0] sm:$0xff]
    %v118 = vld [vmem:[%s1 + $0x1b8] sm:$0xff]
    %v119 = vld [vmem:[%s1 + $0x1c0] sm:$0xff]
    %v120 = vld [vmem:[%s1 + $0x1c8] sm:$0xff]
    %v121 = vld [vmem:[%s1 + $0x1d0] sm:$0xff]
    %v122 = vld [vmem:[%s1 + $0x1d8] sm:$0xff]
    %v123 = vld [vmem:[%s1 + $0x1e0] sm:$0xff]
    %v124 = vld [vmem:[%s1 + $0x1e8] sm:$0xff]
    %v125 = vld [vmem:[%s1 + $0x1f0] sm:$0xff]
    %v126 = vld [vmem:[%s1 + $0x1f8] sm:$0xff]
    %v127 = vand.u32 %v64, 4294901760
    %128 = vmatprep.subr.mxu0 %v127
    %v129 = vand.u32 %v63, 4294901760
    %130 = vmatpush1.msra.mxu0 %v129
    %v131 = vand.u32 %v66, 4294901760
    %132 = vmatprep.subr.mxu0 %v131
    %v133 = vand.u32 %v65, 4294901760
    %134 = vmatpush1.msra.mxu0 %v133
    %v135 = vand.u32 %v68, 4294901760
    %136 = vmatprep.subr.mxu0 %v135
    %v137 = vand.u32 %v67, 4294901760
    %138 = vmatpush1.msra.mxu0 %v137
    %v139 = vand.u32 %v70, 4294901760
    %140 = vmatprep.subr.mxu0 %v139
    %v141 = vand.u32 %v69, 4294901760
    %142 = vmatpush1.msra.mxu0 %v141
    %v143 = vand.u32 %v72, 4294901760
    %144 = vmatprep.subr.mxu0 %v143
    %v145 = vand.u32 %v71, 4294901760
    %146 = vmatpush1.msra.mxu0 %v145
    %v147 = vand.u32 %v74, 4294901760
    %148 = vmatprep.subr.mxu0 %v147
    %v149 = vand.u32 %v73, 4294901760
    %150 = vmatpush1.msra.mxu0 %v149
    %v151 = vand.u32 %v76, 4294901760
    %152 = vmatprep.subr.mxu0 %v151
    %v153 = vand.u32 %v75, 4294901760
    %154 = vmatpush1.msra.mxu0 %v153
    %v155 = vand.u32 %v78, 4294901760
    %156 = vmatprep.subr.mxu0 %v155
    %v157 = vand.u32 %v77, 4294901760
    %158 = vmatpush1.msra.mxu0 %v157
    %v159 = vand.u32 %v80, 4294901760
    %160 = vmatprep.subr.mxu0 %v159
    %v161 = vand.u32 %v79, 4294901760
    %162 = vmatpush1.msra.mxu0 %v161
    %v163 = vand.u32 %v82, 4294901760
    %164 = vmatprep.subr.mxu0 %v163
    %v165 = vand.u32 %v81, 4294901760
    %166 = vmatpush1.msra.mxu0 %v165
    %v167 = vand.u32 %v84, 4294901760
    %168 = vmatprep.subr.mxu0 %v167
    %v169 = vand.u32 %v83, 4294901760
    %170 = vmatpush1.msra.mxu0 %v169
    %v171 = vand.u32 %v86, 4294901760
    %172 = vmatprep.subr.mxu0 %v171
    %v173 = vand.u32 %v85, 4294901760
    %174 = vmatpush1.msra.mxu0 %v173
    %v175 = vand.u32 %v88, 4294901760
    %176 = vmatprep.subr.mxu0 %v175
    %v177 = vand.u32 %v87, 4294901760
    %178 = vmatpush1.msra.mxu0 %v177
    %v179 = vand.u32 %v90, 4294901760
    %180 = vmatprep.subr.mxu0 %v179
    %v181 = vand.u32 %v89, 4294901760
    %182 = vmatpush1.msra.mxu0 %v181
    %v183 = vand.u32 %v92, 4294901760
    %184 = vmatprep.subr.mxu0 %v183
    %v185 = vand.u32 %v91, 4294901760
    %186 = vmatpush1.msra.mxu0 %v185
    %v187 = vand.u32 %v94, 4294901760
    %188 = vmatprep.subr.mxu0 %v187
    %v189 = vand.u32 %v93, 4294901760
    %190 = vmatpush1.msra.mxu0 %v189
    %v191 = vand.u32 %v96, 4294901760
    %192 = vmatprep.subr.mxu0 %v191
    %v193 = vand.u32 %v95, 4294901760
    %194 = vmatpush1.msra.mxu0 %v193
    %v195 = vand.u32 %v98, 4294901760
    %196 = vmatprep.subr.mxu0 %v195
    %v197 = vand.u32 %v97, 4294901760
    %198 = vmatpush1.msra.mxu0 %v197
    %v199 = vand.u32 %v100, 4294901760
    %200 = vmatprep.subr.mxu0 %v199
    %v201 = vand.u32 %v99, 4294901760
    %202 = vmatpush1.msra.mxu0 %v201
    %v203 = vand.u32 %v102, 4294901760
    %204 = vmatprep.subr.mxu0 %v203
    %v205 = vand.u32 %v101, 4294901760
    %206 = vmatpush1.msra.mxu0 %v205
    %v207 = vand.u32 %v104, 4294901760
    %208 = vmatprep.subr.mxu0 %v207
    %v209 = vand.u32 %v103, 4294901760
    %210 = vmatpush1.msra.mxu0 %v209
    %v211 = vand.u32 %v106, 4294901760
    %212 = vmatprep.subr.mxu0 %v211
    %v213 = vand.u32 %v105, 4294901760
    %214 = vmatpush1.msra.mxu0 %v213
    %v215 = vand.u32 %v108, 4294901760
    %216 = vmatprep.subr.mxu0 %v215
    %v217 = vand.u32 %v107, 4294901760
    %218 = vmatpush1.msra.mxu0 %v217
    %v219 = vand.u32 %v110, 4294901760
    %220 = vmatprep.subr.mxu0 %v219
    %v221 = vand.u32 %v109, 4294901760
    %222 = vmatpush1.msra.mxu0 %v221
    %v223 = vand.u32 %v112, 4294901760
    %224 = vmatprep.subr.mxu0 %v223
    %v225 = vand.u32 %v111, 4294901760
    %226 = vmatpush1.msra.mxu0 %v225
    %v227 = vand.u32 %v114, 4294901760
    %228 = vmatprep.subr.mxu0 %v227
    %v229 = vand.u32 %v113, 4294901760
    %230 = vmatpush1.msra.mxu0 %v229
    %v231 = vand.u32 %v116, 4294901760
    %232 = vmatprep.subr.mxu0 %v231
    %v233 = vand.u32 %v115, 4294901760
    %234 = vmatpush1.msra.mxu0 %v233
    %v235 = vand.u32 %v118, 4294901760
    %236 = vmatprep.subr.mxu0 %v235
    %v237 = vand.u32 %v117, 4294901760
    %238 = vmatpush1.msra.mxu0 %v237
    %v239 = vand.u32 %v120, 4294901760
    %240 = vmatprep.subr.mxu0 %v239
    %v241 = vand.u32 %v119, 4294901760
    %242 = vmatpush1.msra.mxu0 %v241
    %v243 = vand.u32 %v122, 4294901760
    %244 = vmatprep.subr.mxu0 %v243
    %v245 = vand.u32 %v121, 4294901760
    %246 = vmatpush1.msra.mxu0 %v245
    %v247 = vand.u32 %v124, 4294901760
    %248 = vmatprep.subr.mxu0 %v247
    %v249 = vand.u32 %v123, 4294901760
    %250 = vmatpush1.msra.mxu0 %v249
    %v251 = vand.u32 %v126, 4294901760
    %252 = vmatprep.subr.mxu0 %v251
    %v253 = vand.u32 %v125, 4294901760
    %254 = vmatpush1.msra.mxu0 %v253
    %v255 = vand.u32 %v62, 4294901760
    %v256 = vsub.f32 %v62, %v255
    %v257 = vand.u32 %v256, 4294901760
    %v258 = vsub.f32 %v256, %v257
    %v259 = vand.u32 %v258, 4294901760
    %260 = vmatprep.mubr.f32.mxu0 %v259
    %v261 = vand.u32 %v61, 4294901760
    %v262 = vsub.f32 %v61, %v261
    %v263 = vand.u32 %v262, 4294901760
    %v264 = vsub.f32 %v262, %v263
    %v265 = vand.u32 %v264, 4294901760
    %266 = vmatmul.mubr.f32.gmra.mrb[0].mxu0 %v265
    %v267 = vpop.f32.mrb[0].mxu0
    %v268 = vadd.f32 0.0, %v267
    %v269 = vpop.f32.mrb[0].mxu0
    %v270 = vadd.f32 0.0, %v269
    %271 = vdwg.mxu0
    %v272 = vand.u32 %v64, 4294901760
    %v273 = vsub.f32 %v64, %v272
    %v274 = vand.u32 %v273, 4294901760
    %v275 = vsub.f32 %v273, %v274
    %v276 = vand.u32 %v275, 4294901760
    %277 = vmatprep.subr.mxu0 %v276
    %v278 = vand.u32 %v63, 4294901760
    %v279 = vsub.f32 %v63, %v278
    %v280 = vand.u32 %v279, 4294901760
    %v281 = vsub.f32 %v279, %v280
    %v282 = vand.u32 %v281, 4294901760
    %283 = vmatpush1.msra.mxu0 %v282
    %v284 = vand.u32 %v66, 4294901760
    %v285 = vsub.f32 %v66, %v284
    %v286 = vand.u32 %v285, 4294901760
    %v287 = vsub.f32 %v285, %v286
    %v288 = vand.u32 %v287, 4294901760
    %289 = vmatprep.subr.mxu0 %v288
    %v290 = vand.u32 %v65, 4294901760
    %v291 = vsub.f32 %v65, %v290
    %v292 = vand.u32 %v291, 4294901760
    %v293 = vsub.f32 %v291, %v292
    %v294 = vand.u32 %v293, 4294901760
    %295 = vmatpush1.msra.mxu0 %v294
    %v296 = vand.u32 %v68, 4294901760
    %v297 = vsub.f32 %v68, %v296
    %v298 = vand.u32 %v297, 4294901760
    %v299 = vsub.f32 %v297, %v298
    %v300 = vand.u32 %v299, 4294901760
    %301 = vmatprep.subr.mxu0 %v300
    %v302 = vand.u32 %v67, 4294901760
    %v303 = vsub.f32 %v67, %v302
    %v304 = vand.u32 %v303, 4294901760
    %v305 = vsub.f32 %v303, %v304
    %v306 = vand.u32 %v305, 4294901760
    %307 = vmatpush1.msra.mxu0 %v306
    %v308 = vand.u32 %v70, 4294901760
    %v309 = vsub.f32 %v70, %v308
    %v310 = vand.u32 %v309, 4294901760
    %v311 = vsub.f32 %v309, %v310
    %v312 = vand.u32 %v311, 4294901760
    %313 = vmatprep.subr.mxu0 %v312
    %v314 = vand.u32 %v69, 4294901760
    %v315 = vsub.f32 %v69, %v314
    %v316 = vand.u32 %v315, 4294901760
    %v317 = vsub.f32 %v315, %v316
    %v318 = vand.u32 %v317, 4294901760
    %319 = vmatpush1.msra.mxu0 %v318
    %v320 = vand.u32 %v72, 4294901760
    %v321 = vsub.f32 %v72, %v320
    %v322 = vand.u32 %v321, 4294901760
    %v323 = vsub.f32 %v321, %v322
    %v324 = vand.u32 %v323, 4294901760
    %325 = vmatprep.subr.mxu0 %v324
    %v326 = vand.u32 %v71, 4294901760
    %v327 = vsub.f32 %v71, %v326
    %v328 = vand.u32 %v327, 4294901760
    %v329 = vsub.f32 %v327, %v328
    %v330 = vand.u32 %v329, 4294901760
    %331 = vmatpush1.msra.mxu0 %v330
    %v332 = vand.u32 %v74, 4294901760
    %v333 = vsub.f32 %v74, %v332
    %v334 = vand.u32 %v333, 4294901760
    %v335 = vsub.f32 %v333, %v334
    %v336 = vand.u32 %v335, 4294901760
    %337 = vmatprep.subr.mxu0 %v336
    %v338 = vand.u32 %v73, 4294901760
    %v339 = vsub.f32 %v73, %v338
    %v340 = vand.u32 %v339, 4294901760
    %v341 = vsub.f32 %v339, %v340
    %v342 = vand.u32 %v341, 4294901760
    %343 = vmatpush1.msra.mxu0 %v342
    %v344 = vand.u32 %v76, 4294901760
    %v345 = vsub.f32 %v76, %v344
    %v346 = vand.u32 %v345, 4294901760
    %v347 = vsub.f32 %v345, %v346
    %v348 = vand.u32 %v347, 4294901760
    %349 = vmatprep.subr.mxu0 %v348
    %v350 = vand.u32 %v75, 4294901760
    %v351 = vsub.f32 %v75, %v350
    %v352 = vand.u32 %v351, 4294901760
    %v353 = vsub.f32 %v351, %v352
    %v354 = vand.u32 %v353, 4294901760
    %355 = vmatpush1.msra.mxu0 %v354
    %v356 = vand.u32 %v78, 4294901760
    %v357 = vsub.f32 %v78, %v356
    %v358 = vand.u32 %v357, 4294901760
    %v359 = vsub.f32 %v357, %v358
    %v360 = vand.u32 %v359, 4294901760
    %361 = vmatprep.subr.mxu0 %v360
    %v362 = vand.u32 %v77, 4294901760
    %v363 = vsub.f32 %v77, %v362
    %v364 = vand.u32 %v363, 4294901760
    %v365 = vsub.f32 %v363, %v364
    %v366 = vand.u32 %v365, 4294901760
    %367 = vmatpush1.msra.mxu0 %v366
    %v368 = vand.u32 %v80, 4294901760
    %v369 = vsub.f32 %v80, %v368
    %v370 = vand.u32 %v369, 4294901760
    %v371 = vsub.f32 %v369, %v370
    %v372 = vand.u32 %v371, 4294901760
    %373 = vmatprep.subr.mxu0 %v372
    %v374 = vand.u32 %v79, 4294901760
    %v375 = vsub.f32 %v79, %v374
    %v376 = vand.u32 %v375, 4294901760
    %v377 = vsub.f32 %v375, %v376
    %v378 = vand.u32 %v377, 4294901760
    %379 = vmatpush1.msra.mxu0 %v378
    %v380 = vand.u32 %v82, 4294901760
    %v381 = vsub.f32 %v82, %v380
    %v382 = vand.u32 %v381, 4294901760
    %v383 = vsub.f32 %v381, %v382
    %v384 = vand.u32 %v383, 4294901760
    %385 = vmatprep.subr.mxu0 %v384
    %v386 = vand.u32 %v81, 4294901760
    %v387 = vsub.f32 %v81, %v386
    %v388 = vand.u32 %v387, 4294901760
    %v389 = vsub.f32 %v387, %v388
    %v390 = vand.u32 %v389, 4294901760
    %391 = vmatpush1.msra.mxu0 %v390
    %v392 = vand.u32 %v84, 4294901760
    %v393 = vsub.f32 %v84, %v392
    %v394 = vand.u32 %v393, 4294901760
    %v395 = vsub.f32 %v393, %v394
    %v396 = vand.u32 %v395, 4294901760
    %397 = vmatprep.subr.mxu0 %v396
    %v398 = vand.u32 %v83, 4294901760
    %v399 = vsub.f32 %v83, %v398
    %v400 = vand.u32 %v399, 4294901760
    %v401 = vsub.f32 %v399, %v400
    %v402 = vand.u32 %v401, 4294901760
    %403 = vmatpush1.msra.mxu0 %v402
    %v404 = vand.u32 %v86, 4294901760
    %v405 = vsub.f32 %v86, %v404
    %v406 = vand.u32 %v405, 4294901760
    %v407 = vsub.f32 %v405, %v406
    %v408 = vand.u32 %v407, 4294901760
    %409 = vmatprep.subr.mxu0 %v408
    %v410 = vand.u32 %v85, 4294901760
    %v411 = vsub.f32 %v85, %v410
    %v412 = vand.u32 %v411, 4294901760
    %v413 = vsub.f32 %v411, %v412
    %v414 = vand.u32 %v413, 4294901760
    %415 = vmatpush1.msra.mxu0 %v414
    %v416 = vand.u32 %v88, 4294901760
    %v417 = vsub.f32 %v88, %v416
    %v418 = vand.u32 %v417, 4294901760
    %v419 = vsub.f32 %v417, %v418
    %v420 = vand.u32 %v419, 4294901760
    %421 = vmatprep.subr.mxu0 %v420
    %v422 = vand.u32 %v87, 4294901760
    %v423 = vsub.f32 %v87, %v422
    %v424 = vand.u32 %v423, 4294901760
    %v425 = vsub.f32 %v423, %v424
    %v426 = vand.u32 %v425, 4294901760
    %427 = vmatpush1.msra.mxu0 %v426
    %v428 = vand.u32 %v90, 4294901760
    %v429 = vsub.f32 %v90, %v428
    %v430 = vand.u32 %v429, 4294901760
    %v431 = vsub.f32 %v429, %v430
    %v432 = vand.u32 %v431, 4294901760
    %433 = vmatprep.subr.mxu0 %v432
    %v434 = vand.u32 %v89, 4294901760
    %v435 = vsub.f32 %v89, %v434
    %v436 = vand.u32 %v435, 4294901760
    %v437 = vsub.f32 %v435, %v436
    %v438 = vand.u32 %v437, 4294901760
    %439 = vmatpush1.msra.mxu0 %v438
    %v440 = vand.u32 %v92, 4294901760
    %v441 = vsub.f32 %v92, %v440
    %v442 = vand.u32 %v441, 4294901760
    %v443 = vsub.f32 %v441, %v442
    %v444 = vand.u32 %v443, 4294901760
    %445 = vmatprep.subr.mxu0 %v444
    %v446 = vand.u32 %v91, 4294901760
    %v447 = vsub.f32 %v91, %v446
    %v448 = vand.u32 %v447, 4294901760
    %v449 = vsub.f32 %v447, %v448
    %v450 = vand.u32 %v449, 4294901760
    %451 = vmatpush1.msra.mxu0 %v450
    %v452 = vand.u32 %v94, 4294901760
    %v453 = vsub.f32 %v94, %v452
    %v454 = vand.u32 %v453, 4294901760
    %v455 = vsub.f32 %v453, %v454
    %v456 = vand.u32 %v455, 4294901760
    %457 = vmatprep.subr.mxu0 %v456
    %v458 = vand.u32 %v93, 4294901760
    %v459 = vsub.f32 %v93, %v458
    %v460 = vand.u32 %v459, 4294901760
    %v461 = vsub.f32 %v459, %v460
    %v462 = vand.u32 %v461, 4294901760
    %463 = vmatpush1.msra.mxu0 %v462
    %v464 = vand.u32 %v96, 4294901760
    %v465 = vsub.f32 %v96, %v464
    %v466 = vand.u32 %v465, 4294901760
    %v467 = vsub.f32 %v465, %v466
    %v468 = vand.u32 %v467, 4294901760
    %469 = vmatprep.subr.mxu0 %v468
    %v470 = vand.u32 %v95, 4294901760
    %v471 = vsub.f32 %v95, %v470
    %v472 = vand.u32 %v471, 4294901760
    %v473 = vsub.f32 %v471, %v472
    %v474 = vand.u32 %v473, 4294901760
    %475 = vmatpush1.msra.mxu0 %v474
    %v476 = vand.u32 %v98, 4294901760
    %v477 = vsub.f32 %v98, %v476
    %v478 = vand.u32 %v477, 4294901760
    %v479 = vsub.f32 %v477, %v478
    %v480 = vand.u32 %v479, 4294901760
    %481 = vmatprep.subr.mxu0 %v480
    %v482 = vand.u32 %v97, 4294901760
    %v483 = vsub.f32 %v97, %v482
    %v484 = vand.u32 %v483, 4294901760
    %v485 = vsub.f32 %v483, %v484
    %v486 = vand.u32 %v485, 4294901760
    %487 = vmatpush1.msra.mxu0 %v486
    %v488 = vand.u32 %v100, 4294901760
    %v489 = vsub.f32 %v100, %v488
    %v490 = vand.u32 %v489, 4294901760
    %v491 = vsub.f32 %v489, %v490
    %v492 = vand.u32 %v491, 4294901760
    %493 = vmatprep.subr.mxu0 %v492
    %v494 = vand.u32 %v99, 4294901760
    %v495 = vsub.f32 %v99, %v494
    %v496 = vand.u32 %v495, 4294901760
    %v497 = vsub.f32 %v495, %v496
    %v498 = vand.u32 %v497, 4294901760
    %499 = vmatpush1.msra.mxu0 %v498
    %v500 = vand.u32 %v102, 4294901760
    %v501 = vsub.f32 %v102, %v500
    %v502 = vand.u32 %v501, 4294901760
    %v503 = vsub.f32 %v501, %v502
    %v504 = vand.u32 %v503, 4294901760
    %505 = vmatprep.subr.mxu0 %v504
    %v506 = vand.u32 %v101, 4294901760
    %v507 = vsub.f32 %v101, %v506
    %v508 = vand.u32 %v507, 4294901760
    %v509 = vsub.f32 %v507, %v508
    %v510 = vand.u32 %v509, 4294901760
    %511 = vmatpush1.msra.mxu0 %v510
    %v512 = vand.u32 %v104, 4294901760
    %v513 = vsub.f32 %v104, %v512
    %v514 = vand.u32 %v513, 4294901760
    %v515 = vsub.f32 %v513, %v514
    %v516 = vand.u32 %v515, 4294901760
    %517 = vmatprep.subr.mxu0 %v516
    %v518 = vand.u32 %v103, 4294901760
    %v519 = vsub.f32 %v103, %v518
    %v520 = vand.u32 %v519, 4294901760
    %v521 = vsub.f32 %v519, %v520
    %v522 = vand.u32 %v521, 4294901760
    %523 = vmatpush1.msra.mxu0 %v522
    %v524 = vand.u32 %v106, 4294901760
    %v525 = vsub.f32 %v106, %v524
    %v526 = vand.u32 %v525, 4294901760
    %v527 = vsub.f32 %v525, %v526
    %v528 = vand.u32 %v527, 4294901760
    %529 = vmatprep.subr.mxu0 %v528
    %v530 = vand.u32 %v105, 4294901760
    %v531 = vsub.f32 %v105, %v530
    %v532 = vand.u32 %v531, 4294901760
    %v533 = vsub.f32 %v531, %v532
    %v534 = vand.u32 %v533, 4294901760
    %535 = vmatpush1.msra.mxu0 %v534
    %v536 = vand.u32 %v108, 4294901760
    %v537 = vsub.f32 %v108, %v536
    %v538 = vand.u32 %v537, 4294901760
    %v539 = vsub.f32 %v537, %v538
    %v540 = vand.u32 %v539, 4294901760
    %541 = vmatprep.subr.mxu0 %v540
    %v542 = vand.u32 %v107, 4294901760
    %v543 = vsub.f32 %v107, %v542
    %v544 = vand.u32 %v543, 4294901760
    %v545 = vsub.f32 %v543, %v544
    %v546 = vand.u32 %v545, 4294901760
    %547 = vmatpush1.msra.mxu0 %v546
    %v548 = vand.u32 %v110, 4294901760
    %v549 = vsub.f32 %v110, %v548
    %v550 = vand.u32 %v549, 4294901760
    %v551 = vsub.f32 %v549, %v550
    %v552 = vand.u32 %v551, 4294901760
    %553 = vmatprep.subr.mxu0 %v552
    %v554 = vand.u32 %v109, 4294901760
    %v555 = vsub.f32 %v109, %v554
    %v556 = vand.u32 %v555, 4294901760
    %v557 = vsub.f32 %v555, %v556
    %v558 = vand.u32 %v557, 4294901760
    %559 = vmatpush1.msra.mxu0 %v558
    %v560 = vand.u32 %v112, 4294901760
    %v561 = vsub.f32 %v112, %v560
    %v562 = vand.u32 %v561, 4294901760
    %v563 = vsub.f32 %v561, %v562
    %v564 = vand.u32 %v563, 4294901760
    %565 = vmatprep.subr.mxu0 %v564
    %v566 = vand.u32 %v111, 4294901760
    %v567 = vsub.f32 %v111, %v566
    %v568 = vand.u32 %v567, 4294901760
    %v569 = vsub.f32 %v567, %v568
    %v570 = vand.u32 %v569, 4294901760
    %571 = vmatpush1.msra.mxu0 %v570
    %v572 = vand.u32 %v114, 4294901760
    %v573 = vsub.f32 %v114, %v572
    %v574 = vand.u32 %v573, 4294901760
    %v575 = vsub.f32 %v573, %v574
    %v576 = vand.u32 %v575, 4294901760
    %577 = vmatprep.subr.mxu0 %v576
    %v578 = vand.u32 %v113, 4294901760
    %v579 = vsub.f32 %v113, %v578
    %v580 = vand.u32 %v579, 4294901760
    %v581 = vsub.f32 %v579, %v580
    %v582 = vand.u32 %v581, 4294901760
    %583 = vmatpush1.msra.mxu0 %v582
    %v584 = vand.u32 %v116, 4294901760
    %v585 = vsub.f32 %v116, %v584
    %v586 = vand.u32 %v585, 4294901760
    %v587 = vsub.f32 %v585, %v586
    %v588 = vand.u32 %v587, 4294901760
    %589 = vmatprep.subr.mxu0 %v588
    %v590 = vand.u32 %v115, 4294901760
    %v591 = vsub.f32 %v115, %v590
    %v592 = vand.u32 %v591, 4294901760
    %v593 = vsub.f32 %v591, %v592
    %v594 = vand.u32 %v593, 4294901760
    %595 = vmatpush1.msra.mxu0 %v594
    %v596 = vand.u32 %v118, 4294901760
    %v597 = vsub.f32 %v118, %v596
    %v598 = vand.u32 %v597, 4294901760
    %v599 = vsub.f32 %v597, %v598
    %v600 = vand.u32 %v599, 4294901760
    %601 = vmatprep.subr.mxu0 %v600
    %v602 = vand.u32 %v117, 4294901760
    %v603 = vsub.f32 %v117, %v602
    %v604 = vand.u32 %v603, 4294901760
    %v605 = vsub.f32 %v603, %v604
    %v606 = vand.u32 %v605, 4294901760
    %607 = vmatpush1.msra.mxu0 %v606
    %v608 = vand.u32 %v120, 4294901760
    %v609 = vsub.f32 %v120, %v608
    %v610 = vand.u32 %v609, 4294901760
    %v611 = vsub.f32 %v609, %v610
    %v612 = vand.u32 %v611, 4294901760
    %613 = vmatprep.subr.mxu0 %v612
    %v614 = vand.u32 %v119, 4294901760
    %v615 = vsub.f32 %v119, %v614
    %v616 = vand.u32 %v615, 4294901760
    %v617 = vsub.f32 %v615, %v616
    %v618 = vand.u32 %v617, 4294901760
    %619 = vmatpush1.msra.mxu0 %v618
    %v620 = vand.u32 %v122, 4294901760
    %v621 = vsub.f32 %v122, %v620
    %v622 = vand.u32 %v621, 4294901760
    %v623 = vsub.f32 %v621, %v622
    %v624 = vand.u32 %v623, 4294901760
    %625 = vmatprep.subr.mxu0 %v624
    %v626 = vand.u32 %v121, 4294901760
    %v627 = vsub.f32 %v121, %v626
    %v628 = vand.u32 %v627, 4294901760
    %v629 = vsub.f32 %v627, %v628
    %v630 = vand.u32 %v629, 4294901760
    %631 = vmatpush1.msra.mxu0 %v630
    %v632 = vand.u32 %v124, 4294901760
    %v633 = vsub.f32 %v124, %v632
    %v634 = vand.u32 %v633, 4294901760
    %v635 = vsub.f32 %v633, %v634
    %v636 = vand.u32 %v635, 4294901760
    %637 = vmatprep.subr.mxu0 %v636
    %v638 = vand.u32 %v123, 4294901760
    %v639 = vsub.f32 %v123, %v638
    %v640 = vand.u32 %v639, 4294901760
    %v641 = vsub.f32 %v639, %v640
    %v642 = vand.u32 %v641, 4294901760
    %643 = vmatpush1.msra.mxu0 %v642
    %v644 = vand.u32 %v126, 4294901760
    %v645 = vsub.f32 %v126, %v644
    %v646 = vand.u32 %v645, 4294901760
    %v647 = vsub.f32 %v645, %v646
    %v648 = vand.u32 %v647, 4294901760
    %649 = vmatprep.subr.mxu0 %v648
    %v650 = vand.u32 %v125, 4294901760
    %v651 = vsub.f32 %v125, %v650
    %v652 = vand.u32 %v651, 4294901760
    %v653 = vsub.f32 %v651, %v652
    %v654 = vand.u32 %v653, 4294901760
    %655 = vmatpush1.msra.mxu0 %v654
    %v656 = vand.u32 %v62, 4294901760
    %657 = vmatprep.mubr.f32.mxu0 %v656
    %v658 = vand.u32 %v61, 4294901760
    %659 = vmatmul.mubr.f32.gmra.mrb[0].mxu0 %v658
    %v660 = vpop.f32.mrb[0].mxu0
    %v661 = vadd.f32 %v268, %v660
    %v662 = vpop.f32.mrb[0].mxu0
    %v663 = vadd.f32 %v270, %v662
    %664 = vdwg.mxu0
    %v665 = vand.u32 %v64, 4294901760
    %v666 = vsub.f32 %v64, %v665
    %667 = vmatprep.subr.mxu0 %v666
    %v668 = vand.u32 %v63, 4294901760
    %v669 = vsub.f32 %v63, %v668
    %670 = vmatpush1.msra.mxu0 %v669
    %v671 = vand.u32 %v66, 4294901760
    %v672 = vsub.f32 %v66, %v671
    %673 = vmatprep.subr.mxu0 %v672
    %v674 = vand.u32 %v65, 4294901760
    %v675 = vsub.f32 %v65, %v674
    %676 = vmatpush1.msra.mxu0 %v675
    %v677 = vand.u32 %v68, 4294901760
    %v678 = vsub.f32 %v68, %v677
    %679 = vmatprep.subr.mxu0 %v678
    %v680 = vand.u32 %v67, 4294901760
    %v681 = vsub.f32 %v67, %v680
    %682 = vmatpush1.msra.mxu0 %v681
    %v683 = vand.u32 %v70, 4294901760
    %v684 = vsub.f32 %v70, %v683
    %685 = vmatprep.subr.mxu0 %v684
    %v686 = vand.u32 %v69, 4294901760
    %v687 = vsub.f32 %v69, %v686
    %688 = vmatpush1.msra.mxu0 %v687
    %v689 = vand.u32 %v72, 4294901760
    %v690 = vsub.f32 %v72, %v689
    %691 = vmatprep.subr.mxu0 %v690
    %v692 = vand.u32 %v71, 4294901760
    %v693 = vsub.f32 %v71, %v692
    %694 = vmatpush1.msra.mxu0 %v693
    %v695 = vand.u32 %v74, 4294901760
    %v696 = vsub.f32 %v74, %v695
    %697 = vmatprep.subr.mxu0 %v696
    %v698 = vand.u32 %v73, 4294901760
    %v699 = vsub.f32 %v73, %v698
    %700 = vmatpush1.msra.mxu0 %v699
    %v701 = vand.u32 %v76, 4294901760
    %v702 = vsub.f32 %v76, %v701
    %703 = vmatprep.subr.mxu0 %v702
    %v704 = vand.u32 %v75, 4294901760
    %v705 = vsub.f32 %v75, %v704
    %706 = vmatpush1.msra.mxu0 %v705
    %v707 = vand.u32 %v78, 4294901760
    %v708 = vsub.f32 %v78, %v707
    %709 = vmatprep.subr.mxu0 %v708
    %v710 = vand.u32 %v77, 4294901760
    %v711 = vsub.f32 %v77, %v710
    %712 = vmatpush1.msra.mxu0 %v711
    %v713 = vand.u32 %v80, 4294901760
    %v714 = vsub.f32 %v80, %v713
    %715 = vmatprep.subr.mxu0 %v714
    %v716 = vand.u32 %v79, 4294901760
    %v717 = vsub.f32 %v79, %v716
    %718 = vmatpush1.msra.mxu0 %v717
    %v719 = vand.u32 %v82, 4294901760
    %v720 = vsub.f32 %v82, %v719
    %721 = vmatprep.subr.mxu0 %v720
    %v722 = vand.u32 %v81, 4294901760
    %v723 = vsub.f32 %v81, %v722
    %724 = vmatpush1.msra.mxu0 %v723
    %v725 = vand.u32 %v84, 4294901760
    %v726 = vsub.f32 %v84, %v725
    %727 = vmatprep.subr.mxu0 %v726
    %v728 = vand.u32 %v83, 4294901760
    %v729 = vsub.f32 %v83, %v728
    %730 = vmatpush1.msra.mxu0 %v729
    %v731 = vand.u32 %v86, 4294901760
    %v732 = vsub.f32 %v86, %v731
    %733 = vmatprep.subr.mxu0 %v732
    %v734 = vand.u32 %v85, 4294901760
    %v735 = vsub.f32 %v85, %v734
    %736 = vmatpush1.msra.mxu0 %v735
    %v737 = vand.u32 %v88, 4294901760
    %v738 = vsub.f32 %v88, %v737
    %739 = vmatprep.subr.mxu0 %v738
    %v740 = vand.u32 %v87, 4294901760
    %v741 = vsub.f32 %v87, %v740
    %742 = vmatpush1.msra.mxu0 %v741
    %v743 = vand.u32 %v90, 4294901760
    %v744 = vsub.f32 %v90, %v743
    %745 = vmatprep.subr.mxu0 %v744
    %v746 = vand.u32 %v89, 4294901760
    %v747 = vsub.f32 %v89, %v746
    %748 = vmatpush1.msra.mxu0 %v747
    %v749 = vand.u32 %v92, 4294901760
    %v750 = vsub.f32 %v92, %v749
    %751 = vmatprep.subr.mxu0 %v750
    %v752 = vand.u32 %v91, 4294901760
    %v753 = vsub.f32 %v91, %v752
    %754 = vmatpush1.msra.mxu0 %v753
    %v755 = vand.u32 %v94, 4294901760
    %v756 = vsub.f32 %v94, %v755
    %757 = vmatprep.subr.mxu0 %v756
    %v758 = vand.u32 %v93, 4294901760
    %v759 = vsub.f32 %v93, %v758
    %760 = vmatpush1.msra.mxu0 %v759
    %v761 = vand.u32 %v96, 4294901760
    %v762 = vsub.f32 %v96, %v761
    %763 = vmatprep.subr.mxu0 %v762
    %v764 = vand.u32 %v95, 4294901760
    %v765 = vsub.f32 %v95, %v764
    %766 = vmatpush1.msra.mxu0 %v765
    %v767 = vand.u32 %v98, 4294901760
    %v768 = vsub.f32 %v98, %v767
    %769 = vmatprep.subr.mxu0 %v768
    %v770 = vand.u32 %v97, 4294901760
    %v771 = vsub.f32 %v97, %v770
    %772 = vmatpush1.msra.mxu0 %v771
    %v773 = vand.u32 %v100, 4294901760
    %v774 = vsub.f32 %v100, %v773
    %775 = vmatprep.subr.mxu0 %v774
    %v776 = vand.u32 %v99, 4294901760
    %v777 = vsub.f32 %v99, %v776
    %778 = vmatpush1.msra.mxu0 %v777
    %v779 = vand.u32 %v102, 4294901760
    %v780 = vsub.f32 %v102, %v779
    %781 = vmatprep.subr.mxu0 %v780
    %v782 = vand.u32 %v101, 4294901760
    %v783 = vsub.f32 %v101, %v782
    %784 = vmatpush1.msra.mxu0 %v783
    %v785 = vand.u32 %v104, 4294901760
    %v786 = vsub.f32 %v104, %v785
    %787 = vmatprep.subr.mxu0 %v786
    %v788 = vand.u32 %v103, 4294901760
    %v789 = vsub.f32 %v103, %v788
    %790 = vmatpush1.msra.mxu0 %v789
    %v791 = vand.u32 %v106, 4294901760
    %v792 = vsub.f32 %v106, %v791
    %793 = vmatprep.subr.mxu0 %v792
    %v794 = vand.u32 %v105, 4294901760
    %v795 = vsub.f32 %v105, %v794
    %796 = vmatpush1.msra.mxu0 %v795
    %v797 = vand.u32 %v108, 4294901760
    %v798 = vsub.f32 %v108, %v797
    %799 = vmatprep.subr.mxu0 %v798
    %v800 = vand.u32 %v107, 4294901760
    %v801 = vsub.f32 %v107, %v800
    %802 = vmatpush1.msra.mxu0 %v801
    %v803 = vand.u32 %v110, 4294901760
    %v804 = vsub.f32 %v110, %v803
    %805 = vmatprep.subr.mxu0 %v804
    %v806 = vand.u32 %v109, 4294901760
    %v807 = vsub.f32 %v109, %v806
    %808 = vmatpush1.msra.mxu0 %v807
    %v809 = vand.u32 %v112, 4294901760
    %v810 = vsub.f32 %v112, %v809
    %811 = vmatprep.subr.mxu0 %v810
    %v812 = vand.u32 %v111, 4294901760
    %v813 = vsub.f32 %v111, %v812
    %814 = vmatpush1.msra.mxu0 %v813
    %v815 = vand.u32 %v114, 4294901760
    %v816 = vsub.f32 %v114, %v815
    %817 = vmatprep.subr.mxu0 %v816
    %v818 = vand.u32 %v113, 4294901760
    %v819 = vsub.f32 %v113, %v818
    %820 = vmatpush1.msra.mxu0 %v819
    %v821 = vand.u32 %v116, 4294901760
    %v822 = vsub.f32 %v116, %v821
    %823 = vmatprep.subr.mxu0 %v822
    %v824 = vand.u32 %v115, 4294901760
    %v825 = vsub.f32 %v115, %v824
    %826 = vmatpush1.msra.mxu0 %v825
    %v827 = vand.u32 %v118, 4294901760
    %v828 = vsub.f32 %v118, %v827
    %829 = vmatprep.subr.mxu0 %v828
    %v830 = vand.u32 %v117, 4294901760
    %v831 = vsub.f32 %v117, %v830
    %832 = vmatpush1.msra.mxu0 %v831
    %v833 = vand.u32 %v120, 4294901760
    %v834 = vsub.f32 %v120, %v833
    %835 = vmatprep.subr.mxu0 %v834
    %v836 = vand.u32 %v119, 4294901760
    %v837 = vsub.f32 %v119, %v836
    %838 = vmatpush1.msra.mxu0 %v837
    %v839 = vand.u32 %v122, 4294901760
    %v840 = vsub.f32 %v122, %v839
    %841 = vmatprep.subr.mxu0 %v840
    %v842 = vand.u32 %v121, 4294901760
    %v843 = vsub.f32 %v121, %v842
    %844 = vmatpush1.msra.mxu0 %v843
    %v845 = vand.u32 %v124, 4294901760
    %v846 = vsub.f32 %v124, %v845
    %847 = vmatprep.subr.mxu0 %v846
    %v848 = vand.u32 %v123, 4294901760
    %v849 = vsub.f32 %v123, %v848
    %850 = vmatpush1.msra.mxu0 %v849
    %v851 = vand.u32 %v126, 4294901760
    %v852 = vsub.f32 %v126, %v851
    %853 = vmatprep.subr.mxu0 %v852
    %v854 = vand.u32 %v125, 4294901760
    %v855 = vsub.f32 %v125, %v854
    %856 = vmatpush1.msra.mxu0 %v855
    %v857 = vand.u32 %v62, 4294901760
    %v858 = vsub.f32 %v62, %v857
    %859 = vmatprep.mubr.f32.mxu0 %v858
    %v860 = vand.u32 %v61, 4294901760
    %v861 = vsub.f32 %v61, %v860
    %862 = vmatmul.mubr.f32.gmra.mrb[0].mxu0 %v861
    %v863 = vpop.f32.mrb[0].mxu0
    %v864 = vadd.f32 %v661, %v863
    %v865 = vpop.f32.mrb[0].mxu0
    %v866 = vadd.f32 %v663, %v865
    %867 = vdwg.mxu0
    %v868 = vand.u32 %v64, 4294901760
    %869 = vmatprep.subr.mxu0 %v868
    %v870 = vand.u32 %v63, 4294901760
    %871 = vmatpush1.msra.mxu0 %v870
    %v872 = vand.u32 %v66, 4294901760
    %873 = vmatprep.subr.mxu0 %v872
    %v874 = vand.u32 %v65, 4294901760
    %875 = vmatpush1.msra.mxu0 %v874
    %v876 = vand.u32 %v68, 4294901760
    %877 = vmatprep.subr.mxu0 %v876
    %v878 = vand.u32 %v67, 4294901760
    %879 = vmatpush1.msra.mxu0 %v878
    %v880 = vand.u32 %v70, 4294901760
    %881 = vmatprep.subr.mxu0 %v880
    %v882 = vand.u32 %v69, 4294901760
    %883 = vmatpush1.msra.mxu0 %v882
    %v884 = vand.u32 %v72, 4294901760
    %885 = vmatprep.subr.mxu0 %v884
    %v886 = vand.u32 %v71, 4294901760
    %887 = vmatpush1.msra.mxu0 %v886
    %v888 = vand.u32 %v74, 4294901760
    %889 = vmatprep.subr.mxu0 %v888
    %v890 = vand.u32 %v73, 4294901760
    %891 = vmatpush1.msra.mxu0 %v890
    %v892 = vand.u32 %v76, 4294901760
    %893 = vmatprep.subr.mxu0 %v892
    %v894 = vand.u32 %v75, 4294901760
    %895 = vmatpush1.msra.mxu0 %v894
    %v896 = vand.u32 %v78, 4294901760
    %897 = vmatprep.subr.mxu0 %v896
    %v898 = vand.u32 %v77, 4294901760
    %899 = vmatpush1.msra.mxu0 %v898
    %v900 = vand.u32 %v80, 4294901760
    %901 = vmatprep.subr.mxu0 %v900
    %v902 = vand.u32 %v79, 4294901760
    %903 = vmatpush1.msra.mxu0 %v902
    %v904 = vand.u32 %v82, 4294901760
    %905 = vmatprep.subr.mxu0 %v904
    %v906 = vand.u32 %v81, 4294901760
    %907 = vmatpush1.msra.mxu0 %v906
    %v908 = vand.u32 %v84, 4294901760
    %909 = vmatprep.subr.mxu0 %v908
    %v910 = vand.u32 %v83, 4294901760
    %911 = vmatpush1.msra.mxu0 %v910
    %v912 = vand.u32 %v86, 4294901760
    %913 = vmatprep.subr.mxu0 %v912
    %v914 = vand.u32 %v85, 4294901760
    %915 = vmatpush1.msra.mxu0 %v914
    %v916 = vand.u32 %v88, 4294901760
    %917 = vmatprep.subr.mxu0 %v916
    %v918 = vand.u32 %v87, 4294901760
    %919 = vmatpush1.msra.mxu0 %v918
    %v920 = vand.u32 %v90, 4294901760
    %921 = vmatprep.subr.mxu0 %v920
    %v922 = vand.u32 %v89, 4294901760
    %923 = vmatpush1.msra.mxu0 %v922
    %v924 = vand.u32 %v92, 4294901760
    %925 = vmatprep.subr.mxu0 %v924
    %v926 = vand.u32 %v91, 4294901760
    %927 = vmatpush1.msra.mxu0 %v926
    %v928 = vand.u32 %v94, 4294901760
    %929 = vmatprep.subr.mxu0 %v928
    %v930 = vand.u32 %v93, 4294901760
    %931 = vmatpush1.msra.mxu0 %v930
    %v932 = vand.u32 %v96, 4294901760
    %933 = vmatprep.subr.mxu0 %v932
    %v934 = vand.u32 %v95, 4294901760
    %935 = vmatpush1.msra.mxu0 %v934
    %v936 = vand.u32 %v98, 4294901760
    %937 = vmatprep.subr.mxu0 %v936
    %v938 = vand.u32 %v97, 4294901760
    %939 = vmatpush1.msra.mxu0 %v938
    %v940 = vand.u32 %v100, 4294901760
    %941 = vmatprep.subr.mxu0 %v940
    %v942 = vand.u32 %v99, 4294901760
    %943 = vmatpush1.msra.mxu0 %v942
    %v944 = vand.u32 %v102, 4294901760
    %945 = vmatprep.subr.mxu0 %v944
    %v946 = vand.u32 %v101, 4294901760
    %947 = vmatpush1.msra.mxu0 %v946
    %v948 = vand.u32 %v104, 4294901760
    %949 = vmatprep.subr.mxu0 %v948
    %v950 = vand.u32 %v103, 4294901760
    %951 = vmatpush1.msra.mxu0 %v950
    %v952 = vand.u32 %v106, 4294901760
    %953 = vmatprep.subr.mxu0 %v952
    %v954 = vand.u32 %v105, 4294901760
    %955 = vmatpush1.msra.mxu0 %v954
    %v956 = vand.u32 %v108, 4294901760
    %957 = vmatprep.subr.mxu0 %v956
    %v958 = vand.u32 %v107, 4294901760
    %959 = vmatpush1.msra.mxu0 %v958
    %v960 = vand.u32 %v110, 4294901760
    %961 = vmatprep.subr.mxu0 %v960
    %v962 = vand.u32 %v109, 4294901760
    %963 = vmatpush1.msra.mxu0 %v962
    %v964 = vand.u32 %v112, 4294901760
    %965 = vmatprep.subr.mxu0 %v964
    %v966 = vand.u32 %v111, 4294901760
    %967 = vmatpush1.msra.mxu0 %v966
    %v968 = vand.u32 %v114, 4294901760
    %969 = vmatprep.subr.mxu0 %v968
    %v970 = vand.u32 %v113, 4294901760
    %971 = vmatpush1.msra.mxu0 %v970
    %v972 = vand.u32 %v116, 4294901760
    %973 = vmatprep.subr.mxu0 %v972
    %v974 = vand.u32 %v115, 4294901760
    %975 = vmatpush1.msra.mxu0 %v974
    %v976 = vand.u32 %v118, 4294901760
    %977 = vmatprep.subr.mxu0 %v976
    %v978 = vand.u32 %v117, 4294901760
    %979 = vmatpush1.msra.mxu0 %v978
    %v980 = vand.u32 %v120, 4294901760
    %981 = vmatprep.subr.mxu0 %v980
    %v982 = vand.u32 %v119, 4294901760
    %983 = vmatpush1.msra.mxu0 %v982
    %v984 = vand.u32 %v122, 4294901760
    %985 = vmatprep.subr.mxu0 %v984
    %v986 = vand.u32 %v121, 4294901760
    %987 = vmatpush1.msra.mxu0 %v986
    %v988 = vand.u32 %v124, 4294901760
    %989 = vmatprep.subr.mxu0 %v988
    %v990 = vand.u32 %v123, 4294901760
    %991 = vmatpush1.msra.mxu0 %v990
    %v992 = vand.u32 %v126, 4294901760
    %993 = vmatprep.subr.mxu0 %v992
    %v994 = vand.u32 %v125, 4294901760
    %995 = vmatpush1.msra.mxu0 %v994
    %v996 = vand.u32 %v62, 4294901760
    %v997 = vsub.f32 %v62, %v996
    %v998 = vand.u32 %v997, 4294901760
    %999 = vmatprep.mubr.f32.mxu0 %v998
    %v1000 = vand.u32 %v61, 4294901760
    %v1001 = vsub.f32 %v61, %v1000
    %v1002 = vand.u32 %v1001, 4294901760
    %1003 = vmatmul.mubr.f32.gmra.mrb[0].mxu0 %v1002
    %v1004 = vpop.f32.mrb[0].mxu0
    %v1005 = vadd.f32 %v864, %v1004
    %v1006 = vpop.f32.mrb[0].mxu0
    %v1007 = vadd.f32 %v866, %v1006
    %1008 = vdwg.mxu0
    %v1009 = vand.u32 %v64, 4294901760
    %v1010 = vsub.f32 %v64, %v1009
    %v1011 = vand.u32 %v1010, 4294901760
    %1012 = vmatprep.subr.mxu0 %v1011
    %v1013 = vand.u32 %v63, 4294901760
    %v1014 = vsub.f32 %v63, %v1013
    %v1015 = vand.u32 %v1014, 4294901760
    %1016 = vmatpush1.msra.mxu0 %v1015
    %v1017 = vand.u32 %v66, 4294901760
    %v1018 = vsub.f32 %v66, %v1017
    %v1019 = vand.u32 %v1018, 4294901760
    %1020 = vmatprep.subr.mxu0 %v1019
    %v1021 = vand.u32 %v65, 4294901760
    %v1022 = vsub.f32 %v65, %v1021
    %v1023 = vand.u32 %v1022, 4294901760
    %1024 = vmatpush1.msra.mxu0 %v1023
    %v1025 = vand.u32 %v68, 4294901760
    %v1026 = vsub.f32 %v68, %v1025
    %v1027 = vand.u32 %v1026, 4294901760
    %1028 = vmatprep.subr.mxu0 %v1027
    %v1029 = vand.u32 %v67, 4294901760
    %v1030 = vsub.f32 %v67, %v1029
    %v1031 = vand.u32 %v1030, 4294901760
    %1032 = vmatpush1.msra.mxu0 %v1031
    %v1033 = vand.u32 %v70, 4294901760
    %v1034 = vsub.f32 %v70, %v1033
    %v1035 = vand.u32 %v1034, 4294901760
    %1036 = vmatprep.subr.mxu0 %v1035
    %v1037 = vand.u32 %v69, 4294901760
    %v1038 = vsub.f32 %v69, %v1037
    %v1039 = vand.u32 %v1038, 4294901760
    %1040 = vmatpush1.msra.mxu0 %v1039
    %v1041 = vand.u32 %v72, 4294901760
    %v1042 = vsub.f32 %v72, %v1041
    %v1043 = vand.u32 %v1042, 4294901760
    %1044 = vmatprep.subr.mxu0 %v1043
    %v1045 = vand.u32 %v71, 4294901760
    %v1046 = vsub.f32 %v71, %v1045
    %v1047 = vand.u32 %v1046, 4294901760
    %1048 = vmatpush1.msra.mxu0 %v1047
    %v1049 = vand.u32 %v74, 4294901760
    %v1050 = vsub.f32 %v74, %v1049
    %v1051 = vand.u32 %v1050, 4294901760
    %1052 = vmatprep.subr.mxu0 %v1051
    %v1053 = vand.u32 %v73, 4294901760
    %v1054 = vsub.f32 %v73, %v1053
    %v1055 = vand.u32 %v1054, 4294901760
    %1056 = vmatpush1.msra.mxu0 %v1055
    %v1057 = vand.u32 %v76, 4294901760
    %v1058 = vsub.f32 %v76, %v1057
    %v1059 = vand.u32 %v1058, 4294901760
    %1060 = vmatprep.subr.mxu0 %v1059
    %v1061 = vand.u32 %v75, 4294901760
    %v1062 = vsub.f32 %v75, %v1061
    %v1063 = vand.u32 %v1062, 4294901760
    %1064 = vmatpush1.msra.mxu0 %v1063
    %v1065 = vand.u32 %v78, 4294901760
    %v1066 = vsub.f32 %v78, %v1065
    %v1067 = vand.u32 %v1066, 4294901760
    %1068 = vmatprep.subr.mxu0 %v1067
    %v1069 = vand.u32 %v77, 4294901760
    %v1070 = vsub.f32 %v77, %v1069
    %v1071 = vand.u32 %v1070, 4294901760
    %1072 = vmatpush1.msra.mxu0 %v1071
    %v1073 = vand.u32 %v80, 4294901760
    %v1074 = vsub.f32 %v80, %v1073
    %v1075 = vand.u32 %v1074, 4294901760
    %1076 = vmatprep.subr.mxu0 %v1075
    %v1077 = vand.u32 %v79, 4294901760
    %v1078 = vsub.f32 %v79, %v1077
    %v1079 = vand.u32 %v1078, 4294901760
    %1080 = vmatpush1.msra.mxu0 %v1079
    %v1081 = vand.u32 %v82, 4294901760
    %v1082 = vsub.f32 %v82, %v1081
    %v1083 = vand.u32 %v1082, 4294901760
    %1084 = vmatprep.subr.mxu0 %v1083
    %v1085 = vand.u32 %v81, 4294901760
    %v1086 = vsub.f32 %v81, %v1085
    %v1087 = vand.u32 %v1086, 4294901760
    %1088 = vmatpush1.msra.mxu0 %v1087
    %v1089 = vand.u32 %v84, 4294901760
    %v1090 = vsub.f32 %v84, %v1089
    %v1091 = vand.u32 %v1090, 4294901760
    %1092 = vmatprep.subr.mxu0 %v1091
    %v1093 = vand.u32 %v83, 4294901760
    %v1094 = vsub.f32 %v83, %v1093
    %v1095 = vand.u32 %v1094, 4294901760
    %1096 = vmatpush1.msra.mxu0 %v1095
    %v1097 = vand.u32 %v86, 4294901760
    %v1098 = vsub.f32 %v86, %v1097
    %v1099 = vand.u32 %v1098, 4294901760
    %1100 = vmatprep.subr.mxu0 %v1099
    %v1101 = vand.u32 %v85, 4294901760
    %v1102 = vsub.f32 %v85, %v1101
    %v1103 = vand.u32 %v1102, 4294901760
    %1104 = vmatpush1.msra.mxu0 %v1103
    %v1105 = vand.u32 %v88, 4294901760
    %v1106 = vsub.f32 %v88, %v1105
    %v1107 = vand.u32 %v1106, 4294901760
    %1108 = vmatprep.subr.mxu0 %v1107
    %v1109 = vand.u32 %v87, 4294901760
    %v1110 = vsub.f32 %v87, %v1109
    %v1111 = vand.u32 %v1110, 4294901760
    %1112 = vmatpush1.msra.mxu0 %v1111
    %v1113 = vand.u32 %v90, 4294901760
    %v1114 = vsub.f32 %v90, %v1113
    %v1115 = vand.u32 %v1114, 4294901760
    %1116 = vmatprep.subr.mxu0 %v1115
    %v1117 = vand.u32 %v89, 4294901760
    %v1118 = vsub.f32 %v89, %v1117
    %v1119 = vand.u32 %v1118, 4294901760
    %1120 = vmatpush1.msra.mxu0 %v1119
    %v1121 = vand.u32 %v92, 4294901760
    %v1122 = vsub.f32 %v92, %v1121
    %v1123 = vand.u32 %v1122, 4294901760
    %1124 = vmatprep.subr.mxu0 %v1123
    %v1125 = vand.u32 %v91, 4294901760
    %v1126 = vsub.f32 %v91, %v1125
    %v1127 = vand.u32 %v1126, 4294901760
    %1128 = vmatpush1.msra.mxu0 %v1127
    %v1129 = vand.u32 %v94, 4294901760
    %v1130 = vsub.f32 %v94, %v1129
    %v1131 = vand.u32 %v1130, 4294901760
    %1132 = vmatprep.subr.mxu0 %v1131
    %v1133 = vand.u32 %v93, 4294901760
    %v1134 = vsub.f32 %v93, %v1133
    %v1135 = vand.u32 %v1134, 4294901760
    %1136 = vmatpush1.msra.mxu0 %v1135
    %v1137 = vand.u32 %v96, 4294901760
    %v1138 = vsub.f32 %v96, %v1137
    %v1139 = vand.u32 %v1138, 4294901760
    %1140 = vmatprep.subr.mxu0 %v1139
    %v1141 = vand.u32 %v95, 4294901760
    %v1142 = vsub.f32 %v95, %v1141
    %v1143 = vand.u32 %v1142, 4294901760
    %1144 = vmatpush1.msra.mxu0 %v1143
    %v1145 = vand.u32 %v98, 4294901760
    %v1146 = vsub.f32 %v98, %v1145
    %v1147 = vand.u32 %v1146, 4294901760
    %1148 = vmatprep.subr.mxu0 %v1147
    %v1149 = vand.u32 %v97, 4294901760
    %v1150 = vsub.f32 %v97, %v1149
    %v1151 = vand.u32 %v1150, 4294901760
    %1152 = vmatpush1.msra.mxu0 %v1151
    %v1153 = vand.u32 %v100, 4294901760
    %v1154 = vsub.f32 %v100, %v1153
    %v1155 = vand.u32 %v1154, 4294901760
    %1156 = vmatprep.subr.mxu0 %v1155
    %v1157 = vand.u32 %v99, 4294901760
    %v1158 = vsub.f32 %v99, %v1157
    %v1159 = vand.u32 %v1158, 4294901760
    %1160 = vmatpush1.msra.mxu0 %v1159
    %v1161 = vand.u32 %v102, 4294901760
    %v1162 = vsub.f32 %v102, %v1161
    %v1163 = vand.u32 %v1162, 4294901760
    %1164 = vmatprep.subr.mxu0 %v1163
    %v1165 = vand.u32 %v101, 4294901760
    %v1166 = vsub.f32 %v101, %v1165
    %v1167 = vand.u32 %v1166, 4294901760
    %1168 = vmatpush1.msra.mxu0 %v1167
    %v1169 = vand.u32 %v104, 4294901760
    %v1170 = vsub.f32 %v104, %v1169
    %v1171 = vand.u32 %v1170, 4294901760
    %1172 = vmatprep.subr.mxu0 %v1171
    %v1173 = vand.u32 %v103, 4294901760
    %v1174 = vsub.f32 %v103, %v1173
    %v1175 = vand.u32 %v1174, 4294901760
    %1176 = vmatpush1.msra.mxu0 %v1175
    %v1177 = vand.u32 %v106, 4294901760
    %v1178 = vsub.f32 %v106, %v1177
    %v1179 = vand.u32 %v1178, 4294901760
    %1180 = vmatprep.subr.mxu0 %v1179
    %v1181 = vand.u32 %v105, 4294901760
    %v1182 = vsub.f32 %v105, %v1181
    %v1183 = vand.u32 %v1182, 4294901760
    %1184 = vmatpush1.msra.mxu0 %v1183
    %v1185 = vand.u32 %v108, 4294901760
    %v1186 = vsub.f32 %v108, %v1185
    %v1187 = vand.u32 %v1186, 4294901760
    %1188 = vmatprep.subr.mxu0 %v1187
    %v1189 = vand.u32 %v107, 4294901760
    %v1190 = vsub.f32 %v107, %v1189
    %v1191 = vand.u32 %v1190, 4294901760
    %1192 = vmatpush1.msra.mxu0 %v1191
    %v1193 = vand.u32 %v110, 4294901760
    %v1194 = vsub.f32 %v110, %v1193
    %v1195 = vand.u32 %v1194, 4294901760
    %1196 = vmatprep.subr.mxu0 %v1195
    %v1197 = vand.u32 %v109, 4294901760
    %v1198 = vsub.f32 %v109, %v1197
    %v1199 = vand.u32 %v1198, 4294901760
    %1200 = vmatpush1.msra.mxu0 %v1199
    %v1201 = vand.u32 %v112, 4294901760
    %v1202 = vsub.f32 %v112, %v1201
    %v1203 = vand.u32 %v1202, 4294901760
    %1204 = vmatprep.subr.mxu0 %v1203
    %v1205 = vand.u32 %v111, 4294901760
    %v1206 = vsub.f32 %v111, %v1205
    %v1207 = vand.u32 %v1206, 4294901760
    %1208 = vmatpush1.msra.mxu0 %v1207
    %v1209 = vand.u32 %v114, 4294901760
    %v1210 = vsub.f32 %v114, %v1209
    %v1211 = vand.u32 %v1210, 4294901760
    %1212 = vmatprep.subr.mxu0 %v1211
    %v1213 = vand.u32 %v113, 4294901760
    %v1214 = vsub.f32 %v113, %v1213
    %v1215 = vand.u32 %v1214, 4294901760
    %1216 = vmatpush1.msra.mxu0 %v1215
    %v1217 = vand.u32 %v116, 4294901760
    %v1218 = vsub.f32 %v116, %v1217
    %v1219 = vand.u32 %v1218, 4294901760
    %1220 = vmatprep.subr.mxu0 %v1219
    %v1221 = vand.u32 %v115, 4294901760
    %v1222 = vsub.f32 %v115, %v1221
    %v1223 = vand.u32 %v1222, 4294901760
    %1224 = vmatpush1.msra.mxu0 %v1223
    %v1225 = vand.u32 %v118, 4294901760
    %v1226 = vsub.f32 %v118, %v1225
    %v1227 = vand.u32 %v1226, 4294901760
    %1228 = vmatprep.subr.mxu0 %v1227
    %v1229 = vand.u32 %v117, 4294901760
    %v1230 = vsub.f32 %v117, %v1229
    %v1231 = vand.u32 %v1230, 4294901760
    %1232 = vmatpush1.msra.mxu0 %v1231
    %v1233 = vand.u32 %v120, 4294901760
    %v1234 = vsub.f32 %v120, %v1233
    %v1235 = vand.u32 %v1234, 4294901760
    %1236 = vmatprep.subr.mxu0 %v1235
    %v1237 = vand.u32 %v119, 4294901760
    %v1238 = vsub.f32 %v119, %v1237
    %v1239 = vand.u32 %v1238, 4294901760
    %1240 = vmatpush1.msra.mxu0 %v1239
    %v1241 = vand.u32 %v122, 4294901760
    %v1242 = vsub.f32 %v122, %v1241
    %v1243 = vand.u32 %v1242, 4294901760
    %1244 = vmatprep.subr.mxu0 %v1243
    %v1245 = vand.u32 %v121, 4294901760
    %v1246 = vsub.f32 %v121, %v1245
    %v1247 = vand.u32 %v1246, 4294901760
    %1248 = vmatpush1.msra.mxu0 %v1247
    %v1249 = vand.u32 %v124, 4294901760
    %v1250 = vsub.f32 %v124, %v1249
    %v1251 = vand.u32 %v1250, 4294901760
    %1252 = vmatprep.subr.mxu0 %v1251
    %v1253 = vand.u32 %v123, 4294901760
    %v1254 = vsub.f32 %v123, %v1253
    %v1255 = vand.u32 %v1254, 4294901760
    %1256 = vmatpush1.msra.mxu0 %v1255
    %v1257 = vand.u32 %v126, 4294901760
    %v1258 = vsub.f32 %v126, %v1257
    %v1259 = vand.u32 %v1258, 4294901760
    %1260 = vmatprep.subr.mxu0 %v1259
    %v1261 = vand.u32 %v125, 4294901760
    %v1262 = vsub.f32 %v125, %v1261
    %v1263 = vand.u32 %v1262, 4294901760
    %1264 = vmatpush1.msra.mxu0 %v1263
    %v1265 = vand.u32 %v62, 4294901760
    %1266 = vmatprep.mubr.f32.mxu0 %v1265
    %v1267 = vand.u32 %v61, 4294901760
    %1268 = vmatmul.mubr.f32.gmra.mrb[0].mxu0 %v1267
    %v1269 = vpop.f32.mrb[0].mxu0
    %v1270 = vadd.f32 %v1005, %v1269
    %v1271 = vpop.f32.mrb[0].mxu0
    %v1272 = vadd.f32 %v1007, %v1271
    %1273 = vdwg.mxu0
    %v1274 = vand.u32 %v64, 4294901760
    %1275 = vmatprep.subr.mxu0 %v1274
    %v1276 = vand.u32 %v63, 4294901760
    %1277 = vmatpush1.msra.mxu0 %v1276
    %v1278 = vand.u32 %v66, 4294901760
    %1279 = vmatprep.subr.mxu0 %v1278
    %v1280 = vand.u32 %v65, 4294901760
    %1281 = vmatpush1.msra.mxu0 %v1280
    %v1282 = vand.u32 %v68, 4294901760
    %1283 = vmatprep.subr.mxu0 %v1282
    %v1284 = vand.u32 %v67, 4294901760
    %1285 = vmatpush1.msra.mxu0 %v1284
    %v1286 = vand.u32 %v70, 4294901760
    %1287 = vmatprep.subr.mxu0 %v1286
    %v1288 = vand.u32 %v69, 4294901760
    %1289 = vmatpush1.msra.mxu0 %v1288
    %v1290 = vand.u32 %v72, 4294901760
    %1291 = vmatprep.subr.mxu0 %v1290
    %v1292 = vand.u32 %v71, 4294901760
    %1293 = vmatpush1.msra.mxu0 %v1292
    %v1294 = vand.u32 %v74, 4294901760
    %1295 = vmatprep.subr.mxu0 %v1294
    %v1296 = vand.u32 %v73, 4294901760
    %1297 = vmatpush1.msra.mxu0 %v1296
    %v1298 = vand.u32 %v76, 4294901760
    %1299 = vmatprep.subr.mxu0 %v1298
    %v1300 = vand.u32 %v75, 4294901760
    %1301 = vmatpush1.msra.mxu0 %v1300
    %v1302 = vand.u32 %v78, 4294901760
    %1303 = vmatprep.subr.mxu0 %v1302
    %v1304 = vand.u32 %v77, 4294901760
    %1305 = vmatpush1.msra.mxu0 %v1304
    %v1306 = vand.u32 %v80, 4294901760
    %1307 = vmatprep.subr.mxu0 %v1306
    %v1308 = vand.u32 %v79, 4294901760
    %1309 = vmatpush1.msra.mxu0 %v1308
    %v1310 = vand.u32 %v82, 4294901760
    %1311 = vmatprep.subr.mxu0 %v1310
    %v1312 = vand.u32 %v81, 4294901760
    %1313 = vmatpush1.msra.mxu0 %v1312
    %v1314 = vand.u32 %v84, 4294901760
    %1315 = vmatprep.subr.mxu0 %v1314
    %v1316 = vand.u32 %v83, 4294901760
    %1317 = vmatpush1.msra.mxu0 %v1316
    %v1318 = vand.u32 %v86, 4294901760
    %1319 = vmatprep.subr.mxu0 %v1318
    %v1320 = vand.u32 %v85, 4294901760
    %1321 = vmatpush1.msra.mxu0 %v1320
    %v1322 = vand.u32 %v88, 4294901760
    %1323 = vmatprep.subr.mxu0 %v1322
    %v1324 = vand.u32 %v87, 4294901760
    %1325 = vmatpush1.msra.mxu0 %v1324
    %v1326 = vand.u32 %v90, 4294901760
    %1327 = vmatprep.subr.mxu0 %v1326
    %v1328 = vand.u32 %v89, 4294901760
    %1329 = vmatpush1.msra.mxu0 %v1328
    %v1330 = vand.u32 %v92, 4294901760
    %1331 = vmatprep.subr.mxu0 %v1330
    %v1332 = vand.u32 %v91, 4294901760
    %1333 = vmatpush1.msra.mxu0 %v1332
    %v1334 = vand.u32 %v94, 4294901760
    %1335 = vmatprep.subr.mxu0 %v1334
    %v1336 = vand.u32 %v93, 4294901760
    %1337 = vmatpush1.msra.mxu0 %v1336
    %v1338 = vand.u32 %v96, 4294901760
    %1339 = vmatprep.subr.mxu0 %v1338
    %v1340 = vand.u32 %v95, 4294901760
    %1341 = vmatpush1.msra.mxu0 %v1340
    %v1342 = vand.u32 %v98, 4294901760
    %1343 = vmatprep.subr.mxu0 %v1342
    %v1344 = vand.u32 %v97, 4294901760
    %1345 = vmatpush1.msra.mxu0 %v1344
    %v1346 = vand.u32 %v100, 4294901760
    %1347 = vmatprep.subr.mxu0 %v1346
    %v1348 = vand.u32 %v99, 4294901760
    %1349 = vmatpush1.msra.mxu0 %v1348
    %v1350 = vand.u32 %v102, 4294901760
    %1351 = vmatprep.subr.mxu0 %v1350
    %v1352 = vand.u32 %v101, 4294901760
    %1353 = vmatpush1.msra.mxu0 %v1352
    %v1354 = vand.u32 %v104, 4294901760
    %1355 = vmatprep.subr.mxu0 %v1354
    %v1356 = vand.u32 %v103, 4294901760
    %1357 = vmatpush1.msra.mxu0 %v1356
    %v1358 = vand.u32 %v106, 4294901760
    %1359 = vmatprep.subr.mxu0 %v1358
    %v1360 = vand.u32 %v105, 4294901760
    %1361 = vmatpush1.msra.mxu0 %v1360
    %v1362 = vand.u32 %v108, 4294901760
    %1363 = vmatprep.subr.mxu0 %v1362
    %v1364 = vand.u32 %v107, 4294901760
    %1365 = vmatpush1.msra.mxu0 %v1364
    %v1366 = vand.u32 %v110, 4294901760
    %1367 = vmatprep.subr.mxu0 %v1366
    %v1368 = vand.u32 %v109, 4294901760
    %1369 = vmatpush1.msra.mxu0 %v1368
    %v1370 = vand.u32 %v112, 4294901760
    %1371 = vmatprep.subr.mxu0 %v1370
    %v1372 = vand.u32 %v111, 4294901760
    %1373 = vmatpush1.msra.mxu0 %v1372
    %v1374 = vand.u32 %v114, 4294901760
    %1375 = vmatprep.subr.mxu0 %v1374
    %v1376 = vand.u32 %v113, 4294901760
    %1377 = vmatpush1.msra.mxu0 %v1376
    %v1378 = vand.u32 %v116, 4294901760
    %1379 = vmatprep.subr.mxu0 %v1378
    %v1380 = vand.u32 %v115, 4294901760
    %1381 = vmatpush1.msra.mxu0 %v1380
    %v1382 = vand.u32 %v118, 4294901760
    %1383 = vmatprep.subr.mxu0 %v1382
    %v1384 = vand.u32 %v117, 4294901760
    %1385 = vmatpush1.msra.mxu0 %v1384
    %v1386 = vand.u32 %v120, 4294901760
    %1387 = vmatprep.subr.mxu0 %v1386
    %v1388 = vand.u32 %v119, 4294901760
    %1389 = vmatpush1.msra.mxu0 %v1388
    %v1390 = vand.u32 %v122, 4294901760
    %1391 = vmatprep.subr.mxu0 %v1390
    %v1392 = vand.u32 %v121, 4294901760
    %1393 = vmatpush1.msra.mxu0 %v1392
    %v1394 = vand.u32 %v124, 4294901760
    %1395 = vmatprep.subr.mxu0 %v1394
    %v1396 = vand.u32 %v123, 4294901760
    %1397 = vmatpush1.msra.mxu0 %v1396
    %v1398 = vand.u32 %v126, 4294901760
    %1399 = vmatprep.subr.mxu0 %v1398
    %v1400 = vand.u32 %v125, 4294901760
    %1401 = vmatpush1.msra.mxu0 %v1400
    %v1402 = vand.u32 %v62, 4294901760
    %1403 = vmatprep.mubr.f32.mxu0 %v1402
    %v1404 = vand.u32 %v61, 4294901760
    %1405 = vmatmul.mubr.f32.gmra.mrb[0].mxu0 %v1404
    %v1406 = vpop.f32.mrb[0].mxu0
    %v1407 = vadd.f32 %v1270, %v1406
    %v1408 = vpop.f32.mrb[0].mxu0
    %v1409 = vadd.f32 %v1272, %v1408
    %1410 = vdwg.mxu0
    %v1411 = vmul.f32 %v1407, %v1407
    %v1412 = vmul.f32 %v1409, %v1409
    %s1413 = sld [smem:[#allocation3]]
    %v1414 = vstv %s1413
    %v1415 = vmul.f32 %v1414, %v1407
    %s1416 = sld [smem:[#allocation3 + $0x1]]
    %v1417 = vstv %s1416
    %v1418 = vmul.f32 %v1417, %v1409
    %v1419 = vadd.f32 %v1415, %v1418
    %s1420 = sld [smem:[#allocation3 + $0x2]]
    %v1421 = vstv %s1420
    %v1422 = vmul.f32 %v1421, %v1411
    %v1423 = vadd.f32 %v1419, %v1422
    %s1424 = sld [smem:[#allocation3 + $0x3]]
    %v1425 = vstv %s1424
    %v1426 = vmul.f32 %v1425, %v1412
    %v1427 = vadd.f32 %v1423, %v1426
    %s1428 = sld [smem:[#allocation6]]
    %v1429 = vstv %s1428
    %v1430 = vadd.f32 %v1427, %v1429
    %s1431 = sld [smem:[#allocation8]]
    %v1432 = vtanh.pop %v1430
    %v1433 = vstv %s1431
    %v1434 = vmul.f32 %v1433, %v1432
    %v1435 = vadd.f32 %v1434, 0.0
    %s1436 = sld [smem:[#allocation3 + $0x80]]
    %v1437 = vstv %s1436
    %v1438 = vmul.f32 %v1437, %v1407
    %s1439 = sld [smem:[#allocation3 + $0x81]]
    %v1440 = vstv %s1439
    %v1441 = vmul.f32 %v1440, %v1409
    %v1442 = vadd.f32 %v1438, %v1441
    %s1443 = sld [smem:[#allocation3 + $0x82]]
    %v1444 = vstv %s1443
    %v1445 = vmul.f32 %v1444, %v1411
    %v1446 = vadd.f32 %v1442, %v1445
    %s1447 = sld [smem:[#allocation3 + $0x83]]
    %v1448 = vstv %s1447
    %v1449 = vmul.f32 %v1448, %v1412
    %v1450 = vadd.f32 %v1446, %v1449
    %s1451 = sld [smem:[#allocation6 + $0x1]]
    %v1452 = vstv %s1451
    %v1453 = vadd.f32 %v1450, %v1452
    %s1454 = sld [smem:[#allocation8 + $0x1]]
    %v1455 = vtanh.pop %v1453
    %v1456 = vstv %s1454
    %v1457 = vmul.f32 %v1456, %v1455
    %v1458 = vadd.f32 %v1435, %v1457
    %s1459 = sld [smem:[#allocation3 + $0x100]]
    %v1460 = vstv %s1459
    %v1461 = vmul.f32 %v1460, %v1407
    %s1462 = sld [smem:[#allocation3 + $0x101]]
    %v1463 = vstv %s1462
    %v1464 = vmul.f32 %v1463, %v1409
    %v1465 = vadd.f32 %v1461, %v1464
    %s1466 = sld [smem:[#allocation3 + $0x102]]
    %v1467 = vstv %s1466
    %v1468 = vmul.f32 %v1467, %v1411
    %v1469 = vadd.f32 %v1465, %v1468
    %s1470 = sld [smem:[#allocation3 + $0x103]]
    %v1471 = vstv %s1470
    %v1472 = vmul.f32 %v1471, %v1412
    %v1473 = vadd.f32 %v1469, %v1472
    %s1474 = sld [smem:[#allocation6 + $0x2]]
    %v1475 = vstv %s1474
    %v1476 = vadd.f32 %v1473, %v1475
    %s1477 = sld [smem:[#allocation8 + $0x2]]
    %v1478 = vtanh.pop %v1476
    %v1479 = vstv %s1477
    %v1480 = vmul.f32 %v1479, %v1478
    %v1481 = vadd.f32 %v1458, %v1480
    %s1482 = sld [smem:[#allocation3 + $0x180]]
    %v1483 = vstv %s1482
    %v1484 = vmul.f32 %v1483, %v1407
    %s1485 = sld [smem:[#allocation3 + $0x181]]
    %v1486 = vstv %s1485
    %v1487 = vmul.f32 %v1486, %v1409
    %v1488 = vadd.f32 %v1484, %v1487
    %s1489 = sld [smem:[#allocation3 + $0x182]]
    %v1490 = vstv %s1489
    %v1491 = vmul.f32 %v1490, %v1411
    %v1492 = vadd.f32 %v1488, %v1491
    %s1493 = sld [smem:[#allocation3 + $0x183]]
    %v1494 = vstv %s1493
    %v1495 = vmul.f32 %v1494, %v1412
    %v1496 = vadd.f32 %v1492, %v1495
    %s1497 = sld [smem:[#allocation6 + $0x3]]
    %v1498 = vstv %s1497
    %v1499 = vadd.f32 %v1496, %v1498
    %s1500 = sld [smem:[#allocation8 + $0x3]]
    %v1501 = vtanh.pop %v1499
    %v1502 = vstv %s1500
    %v1503 = vmul.f32 %v1502, %v1501
    %v1504 = vadd.f32 %v1481, %v1503
    %s1505 = sld [smem:[#allocation3 + $0x200]]
    %v1506 = vstv %s1505
    %v1507 = vmul.f32 %v1506, %v1407
    %s1508 = sld [smem:[#allocation3 + $0x201]]
    %v1509 = vstv %s1508
    %v1510 = vmul.f32 %v1509, %v1409
    %v1511 = vadd.f32 %v1507, %v1510
    %s1512 = sld [smem:[#allocation3 + $0x202]]
    %v1513 = vstv %s1512
    %v1514 = vmul.f32 %v1513, %v1411
    %v1515 = vadd.f32 %v1511, %v1514
    %s1516 = sld [smem:[#allocation3 + $0x203]]
    %v1517 = vstv %s1516
    %v1518 = vmul.f32 %v1517, %v1412
    %v1519 = vadd.f32 %v1515, %v1518
    %s1520 = sld [smem:[#allocation6 + $0x4]]
    %v1521 = vstv %s1520
    %v1522 = vadd.f32 %v1519, %v1521
    %s1523 = sld [smem:[#allocation8 + $0x4]]
    %v1524 = vtanh.pop %v1522
    %v1525 = vstv %s1523
    %v1526 = vmul.f32 %v1525, %v1524
    %v1527 = vadd.f32 %v1504, %v1526
    %s1528 = sld [smem:[#allocation3 + $0x280]]
    %v1529 = vstv %s1528
    %v1530 = vmul.f32 %v1529, %v1407
    %s1531 = sld [smem:[#allocation3 + $0x281]]
    %v1532 = vstv %s1531
    %v1533 = vmul.f32 %v1532, %v1409
    %v1534 = vadd.f32 %v1530, %v1533
    %s1535 = sld [smem:[#allocation3 + $0x282]]
    %v1536 = vstv %s1535
    %v1537 = vmul.f32 %v1536, %v1411
    %v1538 = vadd.f32 %v1534, %v1537
    %s1539 = sld [smem:[#allocation3 + $0x283]]
    %v1540 = vstv %s1539
    %v1541 = vmul.f32 %v1540, %v1412
    %v1542 = vadd.f32 %v1538, %v1541
    %s1543 = sld [smem:[#allocation6 + $0x5]]
    %v1544 = vstv %s1543
    %v1545 = vadd.f32 %v1542, %v1544
    %s1546 = sld [smem:[#allocation8 + $0x5]]
    %v1547 = vtanh.pop %v1545
    %v1548 = vstv %s1546
    %v1549 = vmul.f32 %v1548, %v1547
    %v1550 = vadd.f32 %v1527, %v1549
    %s1551 = sld [smem:[#allocation3 + $0x300]]
    %v1552 = vstv %s1551
    %v1553 = vmul.f32 %v1552, %v1407
    %s1554 = sld [smem:[#allocation3 + $0x301]]
    %v1555 = vstv %s1554
    %v1556 = vmul.f32 %v1555, %v1409
    %v1557 = vadd.f32 %v1553, %v1556
    %s1558 = sld [smem:[#allocation3 + $0x302]]
    %v1559 = vstv %s1558
    %v1560 = vmul.f32 %v1559, %v1411
    %v1561 = vadd.f32 %v1557, %v1560
    %s1562 = sld [smem:[#allocation3 + $0x303]]
    %v1563 = vstv %s1562
    %v1564 = vmul.f32 %v1563, %v1412
    %v1565 = vadd.f32 %v1561, %v1564
    %s1566 = sld [smem:[#allocation6 + $0x6]]
    %v1567 = vstv %s1566
    %v1568 = vadd.f32 %v1565, %v1567
    %s1569 = sld [smem:[#allocation8 + $0x6]]
    %v1570 = vtanh.pop %v1568
    %v1571 = vstv %s1569
    %v1572 = vmul.f32 %v1571, %v1570
    %v1573 = vadd.f32 %v1550, %v1572
    %s1574 = sld [smem:[#allocation3 + $0x380]]
    %v1575 = vstv %s1574
    %v1576 = vmul.f32 %v1575, %v1407
    %s1577 = sld [smem:[#allocation3 + $0x381]]
    %v1578 = vstv %s1577
    %v1579 = vmul.f32 %v1578, %v1409
    %v1580 = vadd.f32 %v1576, %v1579
    %s1581 = sld [smem:[#allocation3 + $0x382]]
    %v1582 = vstv %s1581
    %v1583 = vmul.f32 %v1582, %v1411
    %v1584 = vadd.f32 %v1580, %v1583
    %s1585 = sld [smem:[#allocation3 + $0x383]]
    %v1586 = vstv %s1585
    %v1587 = vmul.f32 %v1586, %v1412
    %v1588 = vadd.f32 %v1584, %v1587
    %s1589 = sld [smem:[#allocation6 + $0x7]]
    %v1590 = vstv %s1589
    %v1591 = vadd.f32 %v1588, %v1590
    %s1592 = sld [smem:[#allocation8 + $0x7]]
    %v1593 = vtanh.pop %v1591
    %v1594 = vstv %s1592
    %v1595 = vmul.f32 %v1594, %v1593
    %v1596 = vadd.f32 %v1573, %v1595
    %s1597 = sld [smem:[#allocation2]]
    %v1598 = vstv %s1597
    %v1599 = vadd.f32 %v1596, %v1598
    %v1600 = vtanh.pop %v1599
    %v1601 = vmul.f32 %v1600, 0.5
    %v1602 = vadd.f32 %v1601, 0.5
    %1603 = vst [vmem:[#allocation9] sm:$0xff] %v1602
    // Predicated region
    $region38: #{mlqp1_forward.1} parent=1 // pred_check
      _
    $region39: #{mlqp1_forward.1} parent=1 // pred_check_branch
      %1605 = sbr.rel (0) target = $region41
    $region40: #{mlqp1_forward.1} parent=1 // pred_region
      %s1607 = ssub.s32 128, 128
      %1608 = vsyncadd [#allocation4], %s1607
      %s1610 = sshll.u32 [#allocation9], 4
      %s1611 = int_to_ptr.vmem [resolvable:$true] %s1610
      %1613 = dma.vmem_to_hbm [thread:$0]  %s1611, 128, %s6, [#allocation4]
    $region41: #{mlqp1_forward.1} parent=1 // pred_fallthru
      _
    // Predicated region
    $region42: #{mlqp1_forward.1} parent=1 // pred_check
      _
    $region43: #{mlqp1_forward.1} parent=1 // pred_check_branch
      %1615 = sbr.rel (0) target = $region45
    $region44: #{mlqp1_forward.1} parent=1 // pred_region
      %1616 = dma.done [#allocation4], 128
    $region45: #{mlqp1_forward.1} parent=1 // pred_fallthru
      _
    %1617 = vsyncpa [#allocation4], 1
    %1618 = vsyncpa [#allocation5], 1
    %1619 = vsyncpa [#allocation7], 1

</llo_original>
